<compile_context>
chip_gen: v6e
topology: v6e:2x2x1
jax: 0.10.0
libtpu: 0.0.40
codegen_flags: <defaults>
</compile_context>

<pallas_src>
import math
import jax
import jax.numpy as jnp
from jax.experimental import pallas as pl
from jax.experimental.pallas import tpu as pltpu

LN_EPS = 1e-5


def _layernorm(x, w, b):
    mu = jnp.mean(x, axis=-1, keepdims=True)
    var = jnp.mean((x - mu) ** 2, axis=-1, keepdims=True)
    return (x - mu) * jax.lax.rsqrt(var + LN_EPS) * w + b


# ----------------------------- Pallas kernel -----------------------------
def encoder_stack_kernel(x_ref, wqkv_ref, wo_ref, w1_ref, w2_ref, vec_ref,
                         o_ref):
    B, S, E = x_ref.shape
    L = wqkv_ref.shape[0]
    dff = w1_ref.shape[2]
    R = B * S

    # Activation stays VMEM/vreg-resident across all layers.
    x = x_ref[...].reshape(R, E)                     # (B*S, E)

    for l in range(L):                               # static unroll over layers
        wqkv = wqkv_ref[l]                           # (E, 3E)  fused Q|K|V, pre-transposed
        wo = wo_ref[l]                               # (E, E)
        w1 = w1_ref[l]                               # (E, dff)
        w2 = w2_ref[l]                               # (dff, E)
        vec = vec_ref[l]                             # (8, W)   packed biases / LN params

        b_qkv = vec[0:1, :3 * E]
        b_o = vec[1:2, :E]
        ln1_w = vec[2:3, :E]
        ln1_b = vec[3:4, :E]
        b_1 = vec[4:5, :dff]
        b_2 = vec[5:6, :E]
        ln2_w = vec[6:7, :E]
        ln2_b = vec[7:8, :E]

        # ---- self attention: one fused QKV MXU push ----
        qkv = jnp.dot(x, wqkv, preferred_element_type=jnp.float32) + b_qkv  # (R, 3E)
        q = qkv[:, :E].reshape(B, S, E)
        k = qkv[:, E:2 * E].reshape(B, S, E)
        v = qkv[:, 2 * E:].reshape(B, S, E)

        # num_heads == E, head_dim == 1, scale = 1/sqrt(1) = 1.
        # E stays dense on the lane axis; softmax reduces over the keys axis.
        scores = q[:, :, None, :] * k[:, None, :, :]              # (B, S, S, E)
        scores = scores - jnp.max(scores, axis=2, keepdims=True)
        p = jnp.exp(scores)
        p = p / jnp.sum(p, axis=2, keepdims=True)                 # softmax over keys
        heads = jnp.sum(p * v[:, None, :, :], axis=2)             # (B, S, E)

        attn = (jnp.dot(heads.reshape(R, E), wo,
                        preferred_element_type=jnp.float32) + b_o)

        # ---- residual + LayerNorm 1 ----
        x = _layernorm(x + attn, ln1_w, ln1_b)

        # ---- feed-forward: Linear -> ReLU -> Linear (Dropout = identity) ----
        h = jnp.maximum(
            jnp.dot(x, w1, preferred_element_type=jnp.float32) + b_1, 0.0)
        ff = jnp.dot(h, w2, preferred_element_type=jnp.float32) + b_2

        # ---- residual + LayerNorm 2 ----
        x = _layernorm(x + ff, ln2_w, ln2_b)

    o_ref[...] = x.reshape(B, S, E).astype(o_ref.dtype)


def transformer_encoder(x_sbe, packed):
    """PyTorch layout in/out: (S, B, E) (batch_first=False)."""
    S, B, E = x_sbe.shape
    x_bse = jnp.transpose(x_sbe, (1, 0, 2))          # (B, S, E) kernel layout

    args = [x_bse, packed["w_qkv"], packed["w_o"], packed["w_1"],
            packed["w_2"], packed["vec"]]

    def full_spec(arr):
        nd = arr.ndim
        return pl.BlockSpec(arr.shape, lambda i, _n=nd: (0,) * _n)

    y = pl.pallas_call(
        encoder_stack_kernel,
        out_shape=jax.ShapeDtypeStruct((B, S, E), jnp.float32),
        grid=(1,),
        in_specs=[full_spec(a) for a in args],
        out_specs=pl.BlockSpec((B, S, E), lambda i: (0, 0, 0)),
        compiler_params=pltpu.CompilerParams(
            dimension_semantics=("arbitrary",)),
    )(*args)

    return jnp.transpose(y, (1, 0, 2))               # back to (S, B, E)


# ------------------------ host-side param packing ------------------------
def pack_params(layer_params):
    """Stack per-layer params, pre-transpose weights for x @ W, fuse QKV,
    and pack all small vectors (biases + LN affine) into one (L, 8, W) blob."""
    E = layer_params[0]["wq"].shape[0]
    dff = layer_params[0]["w1"].shape[0]
    W = max(3 * E, dff, E)

    def pad_row(v):
        return jnp.pad(v, (0, W - v.shape[0]))

    w_qkv, w_o, w_1, w_2, vecs = [], [], [], [], []
    for p in layer_params:
        w_qkv.append(jnp.concatenate([p["wq"], p["wk"], p["wv"]], axis=0).T)  # (E, 3E)
        w_o.append(p["wo"].T)                                                 # (E, E)
        w_1.append(p["w1"].T)                                                 # (E, dff)
        w_2.append(p["w2"].T)                                                 # (dff, E)
        vecs.append(jnp.stack([
            pad_row(jnp.concatenate([p["bq"], p["bk"], p["bv"]])),  # row 0: b_qkv
            pad_row(p["bo"]),                                       # row 1
            pad_row(p["ln1_w"]),                                    # row 2
            pad_row(p["ln1_b"]),                                    # row 3
            pad_row(p["b1"]),                                       # row 4
            pad_row(p["b2"]),                                       # row 5
            pad_row(p["ln2_w"]),                                    # row 6
            pad_row(p["ln2_b"]),                                    # row 7
        ]))
    return {
        "w_qkv": jnp.stack(w_qkv),
        "w_o": jnp.stack(w_o),
        "w_1": jnp.stack(w_1),
        "w_2": jnp.stack(w_2),
        "vec": jnp.stack(vecs),
    }


# --------------------------- pure-JAX reference ---------------------------
def encoder_block_ref(x_bse, p):
    x = x_bse
    q = x @ p["wq"].T + p["bq"]
    k = x @ p["wk"].T + p["bk"]
    v = x @ p["wv"].T + p["bv"]
    scores = q[:, :, None, :] * k[:, None, :, :]     # (B, S, S, E)
    scores = scores - jnp.max(scores, axis=2, keepdims=True)
    pw = jnp.exp(scores)
    pw = pw / jnp.sum(pw, axis=2, keepdims=True)
    heads = jnp.sum(pw * v[:, None, :, :], axis=2)   # (B, S, E)
    attn = heads @ p["wo"].T + p["bo"]
    x = _layernorm(x + attn, p["ln1_w"], p["ln1_b"])
    h = jnp.maximum(x @ p["w1"].T + p["b1"], 0.0)
    ff = h @ p["w2"].T + p["b2"]
    x = _layernorm(x + ff, p["ln2_w"], p["ln2_b"])
    return x


def transformer_encoder_ref(x_sbe, layer_params):
    x = jnp.transpose(x_sbe, (1, 0, 2))
    for p in layer_params:
        x = encoder_block_ref(x, p)
    return jnp.transpose(x, (1, 0, 2))


# ------------------------- deterministic params -------------------------
def init_layer_params(key, E, dff):
    ks = jax.random.split(key, 8)
    bound_in = 1.0 / math.sqrt(E)
    bound_ff = 1.0 / math.sqrt(dff)
    in_proj_w = jax.random.uniform(ks[0], (3 * E, E), jnp.float32,
                                   -bound_in, bound_in)
    in_proj_b = jax.random.uniform(ks[1], (3 * E,), jnp.float32,
                                   -bound_in, bound_in)
    return {
        "wq": in_proj_w[:E], "wk": in_proj_w[E:2 * E], "wv": in_proj_w[2 * E:],
        "bq": in_proj_b[:E], "bk": in_proj_b[E:2 * E], "bv": in_proj_b[2 * E:],
        "wo": jax.random.uniform(ks[2], (E, E), jnp.float32, -bound_in, bound_in),
        "bo": jnp.zeros((E,), jnp.float32),
        "ln1_w": jnp.ones((E,), jnp.float32),
        "ln1_b": jnp.zeros((E,), jnp.float32),
        "w1": jax.random.uniform(ks[3], (dff, E), jnp.float32, -bound_in, bound_in),
        "b1": jax.random.uniform(ks[4], (dff,), jnp.float32, -bound_in, bound_in),
        "w2": jax.random.uniform(ks[5], (E, dff), jnp.float32, -bound_ff, bound_ff),
        "b2": jax.random.uniform(ks[6], (E,), jnp.float32, -bound_ff, bound_ff),
        "ln2_w": jnp.ones((E,), jnp.float32),
        "ln2_b": jnp.zeros((E,), jnp.float32),
    }


if __name__ == "__main__":
    # TransformerEncoder(num_layers=2, input_dim=32, num_heads=4,
    #                    dim_feedforward=64, dropout=0.0)
    # (num_heads=4 only becomes the attention-dropout arg in the reference
    #  constructor; effective heads == input_dim, head_dim == 1.)
    num_layers = 2
    E = 32           # input_dim / embed dim
    dff = 64         # dim_feedforward
    S, B = 8, 2      # seq len, batch

    root = jax.random.PRNGKey(0)
    kx, *kl = jax.random.split(root, 1 + num_layers)
    x = jax.random.normal(kx, (S, B, E), dtype=jnp.float32)  # (seq, batch, embed)

    layer_params = [init_layer_params(k, E, dff) for k in kl]
    packed = pack_params(layer_params)

    y = jax.block_until_ready(transformer_encoder(x, packed))
    y_ref = jax.block_until_ready(transformer_encoder_ref(x, layer_params))

    assert y.shape == (S, B, E)
    assert jnp.allclose(y, y_ref, atol=1e-4, rtol=1e-4), (
        float(jnp.max(jnp.abs(y - y_ref))))

    print("KERNEL_OK")
</pallas_src>

<mosaic_0001>
module attributes {stable_mosaic.version = 11 : i64} {
  func.func @encoder_stack_kernel(%arg0: i32, %arg1: memref<2x8x32xf32, #tpu.memory_space<vmem>>, %arg2: memref<2x32x96xf32, #tpu.memory_space<vmem>>, %arg3: memref<2x32x32xf32, #tpu.memory_space<vmem>>, %arg4: memref<2x32x64xf32, #tpu.memory_space<vmem>>, %arg5: memref<2x64x32xf32, #tpu.memory_space<vmem>>, %arg6: memref<2x8x96xf32, #tpu.memory_space<vmem>>, %arg7: memref<2x8x32xf32, #tpu.memory_space<vmem>>) attributes {dimension_semantics = [#tpu.dimension_semantics<arbitrary>], iteration_bounds = array<i64: 1>, scalar_prefetch = 0 : i64, scratch_operands = 0 : i64, tpu.core_type = #tpu.core_type<tc>, window_params = [{pipeline_mode = #tpu.pipeline_mode<synchronous>, transform_indices = @transform_0, window_bounds = array<i64: 2, 8, 32>}, {pipeline_mode = #tpu.pipeline_mode<synchronous>, transform_indices = @transform_1, window_bounds = array<i64: 2, 32, 96>}, {pipeline_mode = #tpu.pipeline_mode<synchronous>, transform_indices = @transform_2, window_bounds = array<i64: 2, 32, 32>}, {pipeline_mode = #tpu.pipeline_mode<synchronous>, transform_indices = @transform_3, window_bounds = array<i64: 2, 32, 64>}, {pipeline_mode = #tpu.pipeline_mode<synchronous>, transform_indices = @transform_4, window_bounds = array<i64: 2, 64, 32>}, {pipeline_mode = #tpu.pipeline_mode<synchronous>, transform_indices = @transform_5, window_bounds = array<i64: 2, 8, 96>}, {pipeline_mode = #tpu.pipeline_mode<synchronous>, transform_indices = @transform_6, window_bounds = array<i64: 2, 8, 32>}]} {
    %c0 = arith.constant 0 : index
    %c0_0 = arith.constant 0 : index
    %c0_1 = arith.constant 0 : index
    %0 = vector.load %arg1[%c0, %c0_0, %c0_1] : memref<2x8x32xf32, #tpu.memory_space<vmem>>, vector<2x8x32xf32>
    %1 = vector.shape_cast %0 : vector<2x8x32xf32> to vector<16x32xf32>
    %c0_2 = arith.constant 0 : index
    %c0_3 = arith.constant 0 : index
    %c0_4 = arith.constant 0 : index
    %2 = vector.load %arg2[%c0_2, %c0_3, %c0_4] : memref<2x32x96xf32, #tpu.memory_space<vmem>>, vector<1x32x96xf32>
    %3 = vector.shape_cast %2 : vector<1x32x96xf32> to vector<32x96xf32>
    %c0_5 = arith.constant 0 : index
    %c0_6 = arith.constant 0 : index
    %c0_7 = arith.constant 0 : index
    %4 = vector.load %arg3[%c0_5, %c0_6, %c0_7] : memref<2x32x32xf32, #tpu.memory_space<vmem>>, vector<1x32x32xf32>
    %5 = vector.shape_cast %4 : vector<1x32x32xf32> to vector<32x32xf32>
    %c0_8 = arith.constant 0 : index
    %c0_9 = arith.constant 0 : index
    %c0_10 = arith.constant 0 : index
    %6 = vector.load %arg4[%c0_8, %c0_9, %c0_10] : memref<2x32x64xf32, #tpu.memory_space<vmem>>, vector<1x32x64xf32>
    %7 = vector.shape_cast %6 : vector<1x32x64xf32> to vector<32x64xf32>
    %c0_11 = arith.constant 0 : index
    %c0_12 = arith.constant 0 : index
    %c0_13 = arith.constant 0 : index
    %8 = vector.load %arg5[%c0_11, %c0_12, %c0_13] : memref<2x64x32xf32, #tpu.memory_space<vmem>>, vector<1x64x32xf32>
    %9 = vector.shape_cast %8 : vector<1x64x32xf32> to vector<64x32xf32>
    %c0_14 = arith.constant 0 : index
    %c0_15 = arith.constant 0 : index
    %c0_16 = arith.constant 0 : index
    %10 = vector.load %arg6[%c0_14, %c0_15, %c0_16] : memref<2x8x96xf32, #tpu.memory_space<vmem>>, vector<1x8x96xf32>
    %11 = vector.shape_cast %10 : vector<1x8x96xf32> to vector<8x96xf32>
    %12 = vector.extract_strided_slice %11 {offsets = [0, 0], sizes = [1, 96], strides = [1, 1]} : vector<8x96xf32> to vector<1x96xf32>
    %13 = vector.extract_strided_slice %11 {offsets = [1, 0], sizes = [1, 32], strides = [1, 1]} : vector<8x96xf32> to vector<1x32xf32>
    %14 = vector.extract_strided_slice %11 {offsets = [2, 0], sizes = [1, 32], strides = [1, 1]} : vector<8x96xf32> to vector<1x32xf32>
    %15 = vector.extract_strided_slice %11 {offsets = [3, 0], sizes = [1, 32], strides = [1, 1]} : vector<8x96xf32> to vector<1x32xf32>
    %16 = vector.extract_strided_slice %11 {offsets = [4, 0], sizes = [1, 64], strides = [1, 1]} : vector<8x96xf32> to vector<1x64xf32>
    %17 = vector.extract_strided_slice %11 {offsets = [5, 0], sizes = [1, 32], strides = [1, 1]} : vector<8x96xf32> to vector<1x32xf32>
    %18 = vector.extract_strided_slice %11 {offsets = [6, 0], sizes = [1, 32], strides = [1, 1]} : vector<8x96xf32> to vector<1x32xf32>
    %19 = vector.extract_strided_slice %11 {offsets = [7, 0], sizes = [1, 32], strides = [1, 1]} : vector<8x96xf32> to vector<1x32xf32>
    %cst = arith.constant dense<0.000000e+00> : vector<16x96xf32>
    %20 = tpu.matmul %1, %3, %cst {dimension_numbers = #tpu.dot_dimension_numbers<[1], [0], [0], [1], [0, 0, 1, 1], [], []>} : vector<16x32xf32>, vector<32x96xf32>, vector<16x96xf32> -> vector<16x96xf32>
    %21 = vector.broadcast %12 : vector<1x96xf32> to vector<16x96xf32>
    %22 = arith.addf %20, %21 : vector<16x96xf32>
    %23 = vector.extract_strided_slice %22 {offsets = [0, 0], sizes = [16, 32], strides = [1, 1]} : vector<16x96xf32> to vector<16x32xf32>
    %24 = vector.shape_cast %23 : vector<16x32xf32> to vector<2x8x32xf32>
    %25 = vector.extract_strided_slice %22 {offsets = [0, 32], sizes = [16, 32], strides = [1, 1]} : vector<16x96xf32> to vector<16x32xf32>
    %26 = vector.shape_cast %25 : vector<16x32xf32> to vector<2x8x32xf32>
    %27 = vector.extract_strided_slice %22 {offsets = [0, 64], sizes = [16, 32], strides = [1, 1]} : vector<16x96xf32> to vector<16x32xf32>
    %28 = vector.shape_cast %27 : vector<16x32xf32> to vector<2x8x32xf32>
    %29 = vector.shape_cast %24 : vector<2x8x32xf32> to vector<2x8x1x32xf32>
    %30 = vector.shape_cast %26 : vector<2x8x32xf32> to vector<2x1x8x32xf32>
    %31 = vector.broadcast %29 : vector<2x8x1x32xf32> to vector<2x8x8x32xf32>
    %32 = vector.broadcast %30 : vector<2x1x8x32xf32> to vector<2x8x8x32xf32>
    %33 = arith.mulf %31, %32 : vector<2x8x8x32xf32>
    %cst_17 = arith.constant dense<0xFF800000> : vector<2x8x32xf32>
    %34 = vector.multi_reduction <maximumf>, %33, %cst_17 [2] : vector<2x8x8x32xf32> to vector<2x8x32xf32>
    %35 = vector.shape_cast %34 : vector<2x8x32xf32> to vector<2x8x1x32xf32>
    %36 = vector.broadcast %35 : vector<2x8x1x32xf32> to vector<2x8x8x32xf32>
    %37 = arith.subf %33, %36 : vector<2x8x8x32xf32>
    %38 = math.exp %37 : vector<2x8x8x32xf32>
    %cst_18 = arith.constant dense<0.000000e+00> : vector<2x8x32xf32>
    %39 = vector.multi_reduction <add>, %38, %cst_18 [2] : vector<2x8x8x32xf32> to vector<2x8x32xf32>
    %40 = vector.shape_cast %39 : vector<2x8x32xf32> to vector<2x8x1x32xf32>
    %41 = vector.broadcast %40 : vector<2x8x1x32xf32> to vector<2x8x8x32xf32>
    %42 = arith.divf %38, %41 : vector<2x8x8x32xf32>
    %43 = vector.shape_cast %28 : vector<2x8x32xf32> to vector<2x1x8x32xf32>
    %44 = vector.broadcast %43 : vector<2x1x8x32xf32> to vector<2x8x8x32xf32>
    %45 = arith.mulf %42, %44 : vector<2x8x8x32xf32>
    %cst_19 = arith.constant dense<0.000000e+00> : vector<2x8x32xf32>
    %46 = vector.multi_reduction <add>, %45, %cst_19 [2] : vector<2x8x8x32xf32> to vector<2x8x32xf32>
    %47 = vector.shape_cast %46 : vector<2x8x32xf32> to vector<16x32xf32>
    %cst_20 = arith.constant dense<0.000000e+00> : vector<16x32xf32>
    %48 = tpu.matmul %47, %5, %cst_20 {dimension_numbers = #tpu.dot_dimension_numbers<[1], [0], [0], [1], [0, 0, 1, 1], [], []>} : vector<16x32xf32>, vector<32x32xf32>, vector<16x32xf32> -> vector<16x32xf32>
    %49 = vector.broadcast %13 : vector<1x32xf32> to vector<16x32xf32>
    %50 = arith.addf %48, %49 : vector<16x32xf32>
    %51 = arith.addf %1, %50 : vector<16x32xf32>
    %cst_21 = arith.constant dense<0.000000e+00> : vector<16xf32>
    %52 = vector.multi_reduction <add>, %51, %cst_21 [1] : vector<16x32xf32> to vector<16xf32>
    %53 = vector.shape_cast %52 : vector<16xf32> to vector<16x1xf32>
    %cst_22 = arith.constant 3.200000e+01 : f32
    %54 = vector.broadcast %cst_22 : f32 to vector<16x1xf32>
    %55 = arith.divf %53, %54 : vector<16x1xf32>
    %56 = vector.broadcast %55 : vector<16x1xf32> to vector<16x32xf32>
    %57 = arith.subf %51, %56 : vector<16x32xf32>
    %58 = arith.mulf %57, %57 : vector<16x32xf32>
    %cst_23 = arith.constant dense<0.000000e+00> : vector<16xf32>
    %59 = vector.multi_reduction <add>, %58, %cst_23 [1] : vector<16x32xf32> to vector<16xf32>
    %60 = vector.shape_cast %59 : vector<16xf32> to vector<16x1xf32>
    %cst_24 = arith.constant 3.200000e+01 : f32
    %61 = vector.broadcast %cst_24 : f32 to vector<16x1xf32>
    %62 = arith.divf %60, %61 : vector<16x1xf32>
    %63 = vector.broadcast %55 : vector<16x1xf32> to vector<16x32xf32>
    %64 = arith.subf %51, %63 : vector<16x32xf32>
    %cst_25 = arith.constant 9.99999974E-6 : f32
    %65 = vector.broadcast %cst_25 : f32 to vector<16x1xf32>
    %66 = arith.addf %62, %65 : vector<16x1xf32>
    %67 = math.rsqrt %66 : vector<16x1xf32>
    %68 = vector.broadcast %67 : vector<16x1xf32> to vector<16x32xf32>
    %69 = arith.mulf %64, %68 : vector<16x32xf32>
    %70 = vector.broadcast %14 : vector<1x32xf32> to vector<16x32xf32>
    %71 = arith.mulf %69, %70 : vector<16x32xf32>
    %72 = vector.broadcast %15 : vector<1x32xf32> to vector<16x32xf32>
    %73 = arith.addf %71, %72 : vector<16x32xf32>
    %cst_26 = arith.constant dense<0.000000e+00> : vector<16x64xf32>
    %74 = tpu.matmul %73, %7, %cst_26 {dimension_numbers = #tpu.dot_dimension_numbers<[1], [0], [0], [1], [0, 0, 1, 1], [], []>} : vector<16x32xf32>, vector<32x64xf32>, vector<16x64xf32> -> vector<16x64xf32>
    %75 = vector.broadcast %16 : vector<1x64xf32> to vector<16x64xf32>
    %76 = arith.addf %74, %75 : vector<16x64xf32>
    %cst_27 = arith.constant 0.000000e+00 : f32
    %77 = vector.broadcast %cst_27 : f32 to vector<16x64xf32>
    %78 = arith.maximumf %76, %77 : vector<16x64xf32>
    %cst_28 = arith.constant dense<0.000000e+00> : vector<16x32xf32>
    %79 = tpu.matmul %78, %9, %cst_28 {dimension_numbers = #tpu.dot_dimension_numbers<[1], [0], [0], [1], [0, 0, 1, 1], [], []>} : vector<16x64xf32>, vector<64x32xf32>, vector<16x32xf32> -> vector<16x32xf32>
    %80 = vector.broadcast %17 : vector<1x32xf32> to vector<16x32xf32>
    %81 = arith.addf %79, %80 : vector<16x32xf32>
    %82 = arith.addf %73, %81 : vector<16x32xf32>
    %cst_29 = arith.constant dense<0.000000e+00> : vector<16xf32>
    %83 = vector.multi_reduction <add>, %82, %cst_29 [1] : vector<16x32xf32> to vector<16xf32>
    %84 = vector.shape_cast %83 : vector<16xf32> to vector<16x1xf32>
    %cst_30 = arith.constant 3.200000e+01 : f32
    %85 = vector.broadcast %cst_30 : f32 to vector<16x1xf32>
    %86 = arith.divf %84, %85 : vector<16x1xf32>
    %87 = vector.broadcast %86 : vector<16x1xf32> to vector<16x32xf32>
    %88 = arith.subf %82, %87 : vector<16x32xf32>
    %89 = arith.mulf %88, %88 : vector<16x32xf32>
    %cst_31 = arith.constant dense<0.000000e+00> : vector<16xf32>
    %90 = vector.multi_reduction <add>, %89, %cst_31 [1] : vector<16x32xf32> to vector<16xf32>
    %91 = vector.shape_cast %90 : vector<16xf32> to vector<16x1xf32>
    %cst_32 = arith.constant 3.200000e+01 : f32
    %92 = vector.broadcast %cst_32 : f32 to vector<16x1xf32>
    %93 = arith.divf %91, %92 : vector<16x1xf32>
    %94 = vector.broadcast %86 : vector<16x1xf32> to vector<16x32xf32>
    %95 = arith.subf %82, %94 : vector<16x32xf32>
    %cst_33 = arith.constant 9.99999974E-6 : f32
    %96 = vector.broadcast %cst_33 : f32 to vector<16x1xf32>
    %97 = arith.addf %93, %96 : vector<16x1xf32>
    %98 = math.rsqrt %97 : vector<16x1xf32>
    %99 = vector.broadcast %98 : vector<16x1xf32> to vector<16x32xf32>
    %100 = arith.mulf %95, %99 : vector<16x32xf32>
    %101 = vector.broadcast %18 : vector<1x32xf32> to vector<16x32xf32>
    %102 = arith.mulf %100, %101 : vector<16x32xf32>
    %103 = vector.broadcast %19 : vector<1x32xf32> to vector<16x32xf32>
    %104 = arith.addf %102, %103 : vector<16x32xf32>
    %c1 = arith.constant 1 : index
    %c0_34 = arith.constant 0 : index
    %c0_35 = arith.constant 0 : index
    %105 = vector.load %arg2[%c1, %c0_34, %c0_35] : memref<2x32x96xf32, #tpu.memory_space<vmem>>, vector<1x32x96xf32>
    %106 = vector.shape_cast %105 : vector<1x32x96xf32> to vector<32x96xf32>
    %c1_36 = arith.constant 1 : index
    %c0_37 = arith.constant 0 : index
    %c0_38 = arith.constant 0 : index
    %107 = vector.load %arg3[%c1_36, %c0_37, %c0_38] : memref<2x32x32xf32, #tpu.memory_space<vmem>>, vector<1x32x32xf32>
    %108 = vector.shape_cast %107 : vector<1x32x32xf32> to vector<32x32xf32>
    %c1_39 = arith.constant 1 : index
    %c0_40 = arith.constant 0 : index
    %c0_41 = arith.constant 0 : index
    %109 = vector.load %arg4[%c1_39, %c0_40, %c0_41] : memref<2x32x64xf32, #tpu.memory_space<vmem>>, vector<1x32x64xf32>
    %110 = vector.shape_cast %109 : vector<1x32x64xf32> to vector<32x64xf32>
    %c1_42 = arith.constant 1 : index
    %c0_43 = arith.constant 0 : index
    %c0_44 = arith.constant 0 : index
    %111 = vector.load %arg5[%c1_42, %c0_43, %c0_44] : memref<2x64x32xf32, #tpu.memory_space<vmem>>, vector<1x64x32xf32>
    %112 = vector.shape_cast %111 : vector<1x64x32xf32> to vector<64x32xf32>
    %c1_45 = arith.constant 1 : index
    %c0_46 = arith.constant 0 : index
    %c0_47 = arith.constant 0 : index
    %113 = vector.load %arg6[%c1_45, %c0_46, %c0_47] : memref<2x8x96xf32, #tpu.memory_space<vmem>>, vector<1x8x96xf32>
    %114 = vector.shape_cast %113 : vector<1x8x96xf32> to vector<8x96xf32>
    %115 = vector.extract_strided_slice %114 {offsets = [0, 0], sizes = [1, 96], strides = [1, 1]} : vector<8x96xf32> to vector<1x96xf32>
    %116 = vector.extract_strided_slice %114 {offsets = [1, 0], sizes = [1, 32], strides = [1, 1]} : vector<8x96xf32> to vector<1x32xf32>
    %117 = vector.extract_strided_slice %114 {offsets = [2, 0], sizes = [1, 32], strides = [1, 1]} : vector<8x96xf32> to vector<1x32xf32>
    %118 = vector.extract_strided_slice %114 {offsets = [3, 0], sizes = [1, 32], strides = [1, 1]} : vector<8x96xf32> to vector<1x32xf32>
    %119 = vector.extract_strided_slice %114 {offsets = [4, 0], sizes = [1, 64], strides = [1, 1]} : vector<8x96xf32> to vector<1x64xf32>
    %120 = vector.extract_strided_slice %114 {offsets = [5, 0], sizes = [1, 32], strides = [1, 1]} : vector<8x96xf32> to vector<1x32xf32>
    %121 = vector.extract_strided_slice %114 {offsets = [6, 0], sizes = [1, 32], strides = [1, 1]} : vector<8x96xf32> to vector<1x32xf32>
    %122 = vector.extract_strided_slice %114 {offsets = [7, 0], sizes = [1, 32], strides = [1, 1]} : vector<8x96xf32> to vector<1x32xf32>
    %cst_48 = arith.constant dense<0.000000e+00> : vector<16x96xf32>
    %123 = tpu.matmul %104, %106, %cst_48 {dimension_numbers = #tpu.dot_dimension_numbers<[1], [0], [0], [1], [0, 0, 1, 1], [], []>} : vector<16x32xf32>, vector<32x96xf32>, vector<16x96xf32> -> vector<16x96xf32>
    %124 = vector.broadcast %115 : vector<1x96xf32> to vector<16x96xf32>
    %125 = arith.addf %123, %124 : vector<16x96xf32>
    %126 = vector.extract_strided_slice %125 {offsets = [0, 0], sizes = [16, 32], strides = [1, 1]} : vector<16x96xf32> to vector<16x32xf32>
    %127 = vector.shape_cast %126 : vector<16x32xf32> to vector<2x8x32xf32>
    %128 = vector.extract_strided_slice %125 {offsets = [0, 32], sizes = [16, 32], strides = [1, 1]} : vector<16x96xf32> to vector<16x32xf32>
    %129 = vector.shape_cast %128 : vector<16x32xf32> to vector<2x8x32xf32>
    %130 = vector.extract_strided_slice %125 {offsets = [0, 64], sizes = [16, 32], strides = [1, 1]} : vector<16x96xf32> to vector<16x32xf32>
    %131 = vector.shape_cast %130 : vector<16x32xf32> to vector<2x8x32xf32>
    %132 = vector.shape_cast %127 : vector<2x8x32xf32> to vector<2x8x1x32xf32>
    %133 = vector.shape_cast %129 : vector<2x8x32xf32> to vector<2x1x8x32xf32>
    %134 = vector.broadcast %132 : vector<2x8x1x32xf32> to vector<2x8x8x32xf32>
    %135 = vector.broadcast %133 : vector<2x1x8x32xf32> to vector<2x8x8x32xf32>
    %136 = arith.mulf %134, %135 : vector<2x8x8x32xf32>
    %cst_49 = arith.constant dense<0xFF800000> : vector<2x8x32xf32>
    %137 = vector.multi_reduction <maximumf>, %136, %cst_49 [2] : vector<2x8x8x32xf32> to vector<2x8x32xf32>
    %138 = vector.shape_cast %137 : vector<2x8x32xf32> to vector<2x8x1x32xf32>
    %139 = vector.broadcast %138 : vector<2x8x1x32xf32> to vector<2x8x8x32xf32>
    %140 = arith.subf %136, %139 : vector<2x8x8x32xf32>
    %141 = math.exp %140 : vector<2x8x8x32xf32>
    %cst_50 = arith.constant dense<0.000000e+00> : vector<2x8x32xf32>
    %142 = vector.multi_reduction <add>, %141, %cst_50 [2] : vector<2x8x8x32xf32> to vector<2x8x32xf32>
    %143 = vector.shape_cast %142 : vector<2x8x32xf32> to vector<2x8x1x32xf32>
    %144 = vector.broadcast %143 : vector<2x8x1x32xf32> to vector<2x8x8x32xf32>
    %145 = arith.divf %141, %144 : vector<2x8x8x32xf32>
    %146 = vector.shape_cast %131 : vector<2x8x32xf32> to vector<2x1x8x32xf32>
    %147 = vector.broadcast %146 : vector<2x1x8x32xf32> to vector<2x8x8x32xf32>
    %148 = arith.mulf %145, %147 : vector<2x8x8x32xf32>
    %cst_51 = arith.constant dense<0.000000e+00> : vector<2x8x32xf32>
    %149 = vector.multi_reduction <add>, %148, %cst_51 [2] : vector<2x8x8x32xf32> to vector<2x8x32xf32>
    %150 = vector.shape_cast %149 : vector<2x8x32xf32> to vector<16x32xf32>
    %cst_52 = arith.constant dense<0.000000e+00> : vector<16x32xf32>
    %151 = tpu.matmul %150, %108, %cst_52 {dimension_numbers = #tpu.dot_dimension_numbers<[1], [0], [0], [1], [0, 0, 1, 1], [], []>} : vector<16x32xf32>, vector<32x32xf32>, vector<16x32xf32> -> vector<16x32xf32>
    %152 = vector.broadcast %116 : vector<1x32xf32> to vector<16x32xf32>
    %153 = arith.addf %151, %152 : vector<16x32xf32>
    %154 = arith.addf %104, %153 : vector<16x32xf32>
    %cst_53 = arith.constant dense<0.000000e+00> : vector<16xf32>
    %155 = vector.multi_reduction <add>, %154, %cst_53 [1] : vector<16x32xf32> to vector<16xf32>
    %156 = vector.shape_cast %155 : vector<16xf32> to vector<16x1xf32>
    %cst_54 = arith.constant 3.200000e+01 : f32
    %157 = vector.broadcast %cst_54 : f32 to vector<16x1xf32>
    %158 = arith.divf %156, %157 : vector<16x1xf32>
    %159 = vector.broadcast %158 : vector<16x1xf32> to vector<16x32xf32>
    %160 = arith.subf %154, %159 : vector<16x32xf32>
    %161 = arith.mulf %160, %160 : vector<16x32xf32>
    %cst_55 = arith.constant dense<0.000000e+00> : vector<16xf32>
    %162 = vector.multi_reduction <add>, %161, %cst_55 [1] : vector<16x32xf32> to vector<16xf32>
    %163 = vector.shape_cast %162 : vector<16xf32> to vector<16x1xf32>
    %cst_56 = arith.constant 3.200000e+01 : f32
    %164 = vector.broadcast %cst_56 : f32 to vector<16x1xf32>
    %165 = arith.divf %163, %164 : vector<16x1xf32>
    %166 = vector.broadcast %158 : vector<16x1xf32> to vector<16x32xf32>
    %167 = arith.subf %154, %166 : vector<16x32xf32>
    %cst_57 = arith.constant 9.99999974E-6 : f32
    %168 = vector.broadcast %cst_57 : f32 to vector<16x1xf32>
    %169 = arith.addf %165, %168 : vector<16x1xf32>
    %170 = math.rsqrt %169 : vector<16x1xf32>
    %171 = vector.broadcast %170 : vector<16x1xf32> to vector<16x32xf32>
    %172 = arith.mulf %167, %171 : vector<16x32xf32>
    %173 = vector.broadcast %117 : vector<1x32xf32> to vector<16x32xf32>
    %174 = arith.mulf %172, %173 : vector<16x32xf32>
    %175 = vector.broadcast %118 : vector<1x32xf32> to vector<16x32xf32>
    %176 = arith.addf %174, %175 : vector<16x32xf32>
    %cst_58 = arith.constant dense<0.000000e+00> : vector<16x64xf32>
    %177 = tpu.matmul %176, %110, %cst_58 {dimension_numbers = #tpu.dot_dimension_numbers<[1], [0], [0], [1], [0, 0, 1, 1], [], []>} : vector<16x32xf32>, vector<32x64xf32>, vector<16x64xf32> -> vector<16x64xf32>
    %178 = vector.broadcast %119 : vector<1x64xf32> to vector<16x64xf32>
    %179 = arith.addf %177, %178 : vector<16x64xf32>
    %cst_59 = arith.constant 0.000000e+00 : f32
    %180 = vector.broadcast %cst_59 : f32 to vector<16x64xf32>
    %181 = arith.maximumf %179, %180 : vector<16x64xf32>
    %cst_60 = arith.constant dense<0.000000e+00> : vector<16x32xf32>
    %182 = tpu.matmul %181, %112, %cst_60 {dimension_numbers = #tpu.dot_dimension_numbers<[1], [0], [0], [1], [0, 0, 1, 1], [], []>} : vector<16x64xf32>, vector<64x32xf32>, vector<16x32xf32> -> vector<16x32xf32>
    %183 = vector.broadcast %120 : vector<1x32xf32> to vector<16x32xf32>
    %184 = arith.addf %182, %183 : vector<16x32xf32>
    %185 = arith.addf %176, %184 : vector<16x32xf32>
    %cst_61 = arith.constant dense<0.000000e+00> : vector<16xf32>
    %186 = vector.multi_reduction <add>, %185, %cst_61 [1] : vector<16x32xf32> to vector<16xf32>
    %187 = vector.shape_cast %186 : vector<16xf32> to vector<16x1xf32>
    %cst_62 = arith.constant 3.200000e+01 : f32
    %188 = vector.broadcast %cst_62 : f32 to vector<16x1xf32>
    %189 = arith.divf %187, %188 : vector<16x1xf32>
    %190 = vector.broadcast %189 : vector<16x1xf32> to vector<16x32xf32>
    %191 = arith.subf %185, %190 : vector<16x32xf32>
    %192 = arith.mulf %191, %191 : vector<16x32xf32>
    %cst_63 = arith.constant dense<0.000000e+00> : vector<16xf32>
    %193 = vector.multi_reduction <add>, %192, %cst_63 [1] : vector<16x32xf32> to vector<16xf32>
    %194 = vector.shape_cast %193 : vector<16xf32> to vector<16x1xf32>
    %cst_64 = arith.constant 3.200000e+01 : f32
    %195 = vector.broadcast %cst_64 : f32 to vector<16x1xf32>
    %196 = arith.divf %194, %195 : vector<16x1xf32>
    %197 = vector.broadcast %189 : vector<16x1xf32> to vector<16x32xf32>
    %198 = arith.subf %185, %197 : vector<16x32xf32>
    %cst_65 = arith.constant 9.99999974E-6 : f32
    %199 = vector.broadcast %cst_65 : f32 to vector<16x1xf32>
    %200 = arith.addf %196, %199 : vector<16x1xf32>
    %201 = math.rsqrt %200 : vector<16x1xf32>
    %202 = vector.broadcast %201 : vector<16x1xf32> to vector<16x32xf32>
    %203 = arith.mulf %198, %202 : vector<16x32xf32>
    %204 = vector.broadcast %121 : vector<1x32xf32> to vector<16x32xf32>
    %205 = arith.mulf %203, %204 : vector<16x32xf32>
    %206 = vector.broadcast %122 : vector<1x32xf32> to vector<16x32xf32>
    %207 = arith.addf %205, %206 : vector<16x32xf32>
    %208 = vector.shape_cast %207 : vector<16x32xf32> to vector<2x8x32xf32>
    %c0_66 = arith.constant 0 : index
    %c0_67 = arith.constant 0 : index
    %c0_68 = arith.constant 0 : index
    %209 = vector.load %arg7[%c0_66, %c0_67, %c0_68] : memref<2x8x32xf32, #tpu.memory_space<vmem>>, vector<2x8x32xf32>
    tpu.vector_store %arg7[%c0_66, %c0_67, %c0_68], %208 {strides = array<i32>} : memref<2x8x32xf32, #tpu.memory_space<vmem>>, vector<2x8x32xf32>,
    return
  }
  func.func @transform_0(%arg0: i32) -> (i32, i32, i32) {
    %c0_i32 = arith.constant 0 : i32
    %c0_i32_0 = arith.constant 0 : i32
    %c0_i32_1 = arith.constant 0 : i32
    %c0_i32_2 = arith.constant 0 : i32
    return %c0_i32, %c0_i32_0, %c0_i32_1 : i32, i32, i32
  }
  func.func @transform_1(%arg0: i32) -> (i32, i32, i32) {
    %c0_i32 = arith.constant 0 : i32
    %c0_i32_0 = arith.constant 0 : i32
    %c0_i32_1 = arith.constant 0 : i32
    %c0_i32_2 = arith.constant 0 : i32
    return %c0_i32, %c0_i32_0, %c0_i32_1 : i32, i32, i32
  }
  func.func @transform_2(%arg0: i32) -> (i32, i32, i32) {
    %c0_i32 = arith.constant 0 : i32
    %c0_i32_0 = arith.constant 0 : i32
    %c0_i32_1 = arith.constant 0 : i32
    %c0_i32_2 = arith.constant 0 : i32
    return %c0_i32, %c0_i32_0, %c0_i32_1 : i32, i32, i32
  }
  func.func @transform_3(%arg0: i32) -> (i32, i32, i32) {
    %c0_i32 = arith.constant 0 : i32
    %c0_i32_0 = arith.constant 0 : i32
    %c0_i32_1 = arith.constant 0 : i32
    %c0_i32_2 = arith.constant 0 : i32
    return %c0_i32, %c0_i32_0, %c0_i32_1 : i32, i32, i32
  }
  func.func @transform_4(%arg0: i32) -> (i32, i32, i32) {
    %c0_i32 = arith.constant 0 : i32
    %c0_i32_0 = arith.constant 0 : i32
    %c0_i32_1 = arith.constant 0 : i32
    %c0_i32_2 = arith.constant 0 : i32
    return %c0_i32, %c0_i32_0, %c0_i32_1 : i32, i32, i32
  }
  func.func @transform_5(%arg0: i32) -> (i32, i32, i32) {
    %c0_i32 = arith.constant 0 : i32
    %c0_i32_0 = arith.constant 0 : i32
    %c0_i32_1 = arith.constant 0 : i32
    %c0_i32_2 = arith.constant 0 : i32
    return %c0_i32, %c0_i32_0, %c0_i32_1 : i32, i32, i32
  }
  func.func @transform_6(%arg0: i32) -> (i32, i32, i32) {
    %c0_i32 = arith.constant 0 : i32
    %c0_i32_0 = arith.constant 0 : i32
    %c0_i32_1 = arith.constant 0 : i32
    %c0_i32_2 = arith.constant 0 : i32
    return %c0_i32, %c0_i32_0, %c0_i32_1 : i32, i32, i32
  }
}

</mosaic_0001>

<llo_original>
// kernel: tpu_custom_call.1
$region0: #{tpu_custom_call.1}
  #allocation0 [shape = 'u32[]', space=smem, size = 0x4, offset = 0x4, fixed_abs, tag = 'smem constant byte address 0x4 - core index']
  #allocation1 [shape = 'u32[144,128]{1,0:T(1,128)}', space=vmem, size = 0x12000, scoped, tag = 'internal scratch']
  %s0 = inlined_call_operand.hbm [shape: f32[2,8,32], index: 0, kind: input, shape index: {}]
  %s1 = inlined_call_operand.vmem [shape: f32[2,32,96], index: 1, kind: input, shape index: {}]
  %s2 = inlined_call_operand.vmem [shape: f32[2,32,32], index: 2, kind: input, shape index: {}]
  %s3 = inlined_call_operand.vmem [shape: f32[2,32,64], index: 3, kind: input, shape index: {}]
  %s4 = inlined_call_operand.vmem [shape: f32[2,64,32], index: 4, kind: input, shape index: {}]
  %s5 = inlined_call_operand.hbm [shape: f32[2,8,96], index: 5, kind: input, shape index: {}]
  %s6 = inlined_call_operand.hbm [shape: f32[2,8,32], index: 6, kind: output, shape index: {}]
  %s7 = sld [smem:[#allocation0]]
  $region42: #{tpu_custom_call.1} parent=0
    _
  %s9 = ssub.s32 1, %s7
  %s10 = scalar_select 0, %s9, %s7
  $region1: #{tpu_custom_call.1} parent=0
    #allocation2 [shape = 'u8[8192]{0}', space=vmem, size = 0x2000, scoped, tag = 'input window, operand 0, single buffered']
    #allocation3 [shape = 's32[1]{0}', space=sflag, size = 0x4, scoped, tag = 'scoped memory for tpu_custom_call.1']
    #allocation4 [shape = 's32[1]{0}', space=sflag, size = 0x4, scoped, tag = 'scoped memory for tpu_custom_call.1']
    #allocation5 [shape = 'u8[8192]{0}', space=vmem, size = 0x2000, scoped, tag = 'input window, operand 5, single buffered']
    #allocation6 [shape = 's32[1]{0}', space=sflag, size = 0x4, scoped, tag = 'scoped memory for tpu_custom_call.1']
    #allocation7 [shape = 'u8[8192]{0}', space=vmem, size = 0x2000, scoped, tag = 'output window, operand 0, single buffered']
    %11 = vsyncpa [#allocation3], 0
    %12 = vsyncpa [#allocation6], 0
    %13 = vsyncpa [#allocation4], 0
    // Predicated region
    $region2: #{tpu_custom_call.1} parent=1 // pred_check
      _
    $region3: #{tpu_custom_call.1} parent=1 // pred_check_branch
      %15 = sbr.rel (0) target = $region5
    $region4: #{tpu_custom_call.1} parent=1 // pred_region
      %s17 = ssub.s32 256, 256
      %18 = vsyncadd [#allocation3], %s17
      %s19 = sshll.u32 [#allocation2], 4
      %s20 = int_to_ptr.vmem [resolvable:$true] %s19
      %25 = dma.hbm_to_vmem [thread:$0]  %s0, 256, %s20, [#allocation3], 128, 128, 8
    $region5: #{tpu_custom_call.1} parent=1 // pred_fallthru
      _
    // Predicated region
    $region6: #{tpu_custom_call.1} parent=1 // pred_check
      _
    $region7: #{tpu_custom_call.1} parent=1 // pred_check_branch
      %27 = sbr.rel (0) target = $region9
    $region8: #{tpu_custom_call.1} parent=1 // pred_region
      _
    $region9: #{tpu_custom_call.1} parent=1 // pred_fallthru
      _
    // Predicated region
    $region10: #{tpu_custom_call.1} parent=1 // pred_check
      _
    $region11: #{tpu_custom_call.1} parent=1 // pred_check_branch
      %29 = sbr.rel (0) target = $region13
    $region12: #{tpu_custom_call.1} parent=1 // pred_region
      _
    $region13: #{tpu_custom_call.1} parent=1 // pred_fallthru
      _
    // Predicated region
    $region14: #{tpu_custom_call.1} parent=1 // pred_check
      _
    $region15: #{tpu_custom_call.1} parent=1 // pred_check_branch
      %31 = sbr.rel (0) target = $region17
    $region16: #{tpu_custom_call.1} parent=1 // pred_region
      _
    $region17: #{tpu_custom_call.1} parent=1 // pred_fallthru
      _
    // Predicated region
    $region18: #{tpu_custom_call.1} parent=1 // pred_check
      _
    $region19: #{tpu_custom_call.1} parent=1 // pred_check_branch
      %33 = sbr.rel (0) target = $region21
    $region20: #{tpu_custom_call.1} parent=1 // pred_region
      _
    $region21: #{tpu_custom_call.1} parent=1 // pred_fallthru
      _
    // Predicated region
    $region22: #{tpu_custom_call.1} parent=1 // pred_check
      _
    $region23: #{tpu_custom_call.1} parent=1 // pred_check_branch
      %35 = sbr.rel (0) target = $region25
    $region24: #{tpu_custom_call.1} parent=1 // pred_region
      %s37 = ssub.s32 256, 256
      %38 = vsyncadd [#allocation6], %s37
      %s39 = sshll.u32 [#allocation5], 4
      %s40 = int_to_ptr.vmem [resolvable:$true] %s39
      %45 = dma.hbm_to_vmem [thread:$0]  %s5, 256, %s40, [#allocation6], 128, 128, 8
    $region25: #{tpu_custom_call.1} parent=1 // pred_fallthru
      _
    // Predicated region
    $region26: #{tpu_custom_call.1} parent=1 // pred_check
      _
    $region27: #{tpu_custom_call.1} parent=1 // pred_check_branch
      %47 = sbr.rel (0) target = $region29
    $region28: #{tpu_custom_call.1} parent=1 // pred_region
      %48 = dma.done [#allocation3], 256
    $region29: #{tpu_custom_call.1} parent=1 // pred_fallthru
      _
    // Predicated region
    $region30: #{tpu_custom_call.1} parent=1 // pred_check
      _
    $region31: #{tpu_custom_call.1} parent=1 // pred_check_branch
      %50 = sbr.rel (0) target = $region33
    $region32: #{tpu_custom_call.1} parent=1 // pred_region
      %51 = dma.done [#allocation6], 256
    $region33: #{tpu_custom_call.1} parent=1 // pred_fallthru
      _
    %v52 = vld [vmem:[#allocation2] sm:$0xff]
    %v53 = vld [vmem:[#allocation2 + $0x8] sm:$0xff]
    %v54 = vld [vmem:[%s1] sm:$0xff]
    %v55 = vld [vmem:[%s1 + $0x8] sm:$0xff]
    %v56 = vld [vmem:[%s1 + $0x10] sm:$0xff]
    %v57 = vld [vmem:[%s1 + $0x18] sm:$0xff]
    %v58 = vld [vmem:[%s2] sm:$0xff]
    %v59 = vld [vmem:[%s2 + $0x8] sm:$0xff]
    %v60 = vld [vmem:[%s2 + $0x10] sm:$0xff]
    %v61 = vld [vmem:[%s2 + $0x18] sm:$0xff]
    %v62 = vld [vmem:[%s3] sm:$0xff]
    %v63 = vld [vmem:[%s3 + $0x8] sm:$0xff]
    %v64 = vld [vmem:[%s3 + $0x10] sm:$0xff]
    %v65 = vld [vmem:[%s3 + $0x18] sm:$0xff]
    %v66 = vld [vmem:[%s4] sm:$0xff]
    %v67 = vld [vmem:[%s4 + $0x8] sm:$0xff]
    %v68 = vld [vmem:[%s4 + $0x10] sm:$0xff]
    %v69 = vld [vmem:[%s4 + $0x18] sm:$0xff]
    %v70 = vld [vmem:[%s4 + $0x20] sm:$0xff]
    %v71 = vld [vmem:[%s4 + $0x28] sm:$0xff]
    %v72 = vld [vmem:[%s4 + $0x30] sm:$0xff]
    %v73 = vld [vmem:[%s4 + $0x38] sm:$0xff]
    %v74 = vld [vmem:[#allocation5] sm:$0xff]
    %v75 = vlaneseq
    %v76 = vshrl.u32 %v75, 7
    %v77 = vsub.s32 0, %v76
    %v78 = vrot.slane %v74, %v77
    %vm79 = vcmask 261120
    %v81 = vsel %vm79, %v52, 0
    %v84 = vsel %vm79, %v53, 0
    %86 = vmatprep.subr.mxu0 0.0
    %87 = vmatpush1.msra.mxu0 0.0
    %88 = vmatprep.subr.mxu0 0.0
    %89 = vmatpush1.msra.mxu0 0.0
    %90 = vmatprep.subr.mxu0 0.0
    %91 = vmatpush1.msra.mxu0 0.0
    %92 = vmatprep.subr.mxu0 0.0
    %93 = vmatpush1.msra.mxu0 0.0
    %94 = vmatprep.subr.mxu0 0.0
    %95 = vmatpush1.msra.mxu0 0.0
    %96 = vmatprep.subr.mxu0 0.0
    %97 = vmatpush1.msra.mxu0 0.0
    %98 = vmatprep.subr.mxu0 0.0
    %99 = vmatpush1.msra.mxu0 0.0
    %100 = vmatprep.subr.mxu0 0.0
    %101 = vmatpush1.msra.mxu0 0.0
    %102 = vmatprep.subr.mxu0 0.0
    %103 = vmatpush1.msra.mxu0 0.0
    %104 = vmatprep.subr.mxu0 0.0
    %105 = vmatpush1.msra.mxu0 0.0
    %106 = vmatprep.subr.mxu0 0.0
    %107 = vmatpush1.msra.mxu0 0.0
    %108 = vmatprep.subr.mxu0 0.0
    %109 = vmatpush1.msra.mxu0 0.0
    %110 = vmatprep.subr.mxu0 0.0
    %111 = vmatpush1.msra.mxu0 %v57
    %112 = vmatprep.subr.mxu0 0.0
    %113 = vmatpush1.msra.mxu0 %v56
    %114 = vmatprep.subr.mxu0 0.0
    %115 = vmatpush1.msra.mxu0 %v55
    %116 = vmatprep.subr.mxu0 0.0
    %117 = vmatpush1.msra.mxu0 %v54
    %118 = vmatprep.subr.mxu0 0.0
    %119 = vmatpush2.msra.mxu0 0.0
    %120 = vmatprep.subr.mxu0 0.0
    %121 = vmatpush2.msra.mxu0 0.0
    %122 = vmatprep.subr.mxu0 0.0
    %123 = vmatpush2.msra.mxu0 0.0
    %124 = vmatprep.subr.mxu0 0.0
    %125 = vmatpush2.msra.mxu0 0.0
    %126 = vmatprep.subr.mxu0 0.0
    %127 = vmatpush2.msra.mxu0 0.0
    %128 = vmatprep.subr.mxu0 0.0
    %129 = vmatpush2.msra.mxu0 0.0
    %130 = vmatprep.subr.mxu0 0.0
    %131 = vmatpush2.msra.mxu0 0.0
    %132 = vmatprep.subr.mxu0 0.0
    %133 = vmatpush2.msra.mxu0 0.0
    %134 = vmatprep.subr.mxu0 0.0
    %135 = vmatpush2.msra.mxu0 0.0
    %136 = vmatprep.subr.mxu0 0.0
    %137 = vmatpush2.msra.mxu0 0.0
    %138 = vmatprep.subr.mxu0 0.0
    %139 = vmatpush2.msra.mxu0 0.0
    %140 = vmatprep.subr.mxu0 0.0
    %141 = vmatpush2.msra.mxu0 0.0
    %142 = vmatprep.subr.mxu0 0.0
    %143 = vmatpush2.msra.mxu0 0.0
    %144 = vmatprep.subr.mxu0 0.0
    %145 = vmatpush2.msra.mxu0 0.0
    %146 = vmatprep.subr.mxu0 0.0
    %147 = vmatpush2.msra.mxu0 0.0
    %148 = vmatprep.subr.mxu0 0.0
    %149 = vmatpush2.msra.mxu0 0.0
    %150 = vmatprep.mubr.f32.mxu0 0.0
    %151 = vmatmul.mubr.f32.gmra.mxu0 %v81
    %v152 = vpop.f32.mrf.mxu0
    %v153 = vadd.f32 %v78, %v152
    %v154 = vpop.f32.mrf.mxu0
    %155 = vmatprep.mubr.f32.mxu0 0.0
    %156 = vmatmul.mubr.f32.gmra.mxu0 %v84
    %v157 = vpop.f32.mrf.mxu0
    %v158 = vadd.f32 %v78, %v157
    %v159 = vpop.f32.mrf.mxu0
    %160 = vdwg.mxu0
    %v163 = vcombine.high %v153, %v153
    %v165 = vunpack.c.l.s4 1966171168
    %v166 = vunpack.c.0.s8 %v165
    %v167 = vlaneseq
    %v168 = vshrl.u32 %v167, 7
    %v169 = vsub.s32 %v166, %v168
    %v170 = vrot.slane %v153, %v169
    %v172 = vunpack.c.l.s4 1966171168
    %v173 = vunpack.c.0.s8 %v172
    %v174 = vlaneseq
    %v175 = vshrl.u32 %v174, 7
    %v176 = vsub.s32 %v173, %v175
    %v177 = vrot.slane %v163, %v176
    %v178 = vcombine.high %v170, %v170
    %v179 = vcombine.high %v177, %v177
    %v181 = vunpack.c.l.s4 1966171168
    %v182 = vunpack.c.0.s8 %v181
    %v183 = vlaneseq
    %v184 = vshrl.u32 %v183, 7
    %v185 = vsub.s32 %v182, %v184
    %v186 = vrot.slane %v170, %v185
    %v188 = vunpack.c.l.s4 1966171168
    %v189 = vunpack.c.0.s8 %v188
    %v190 = vlaneseq
    %v191 = vshrl.u32 %v190, 7
    %v192 = vsub.s32 %v189, %v191
    %v193 = vrot.slane %v177, %v192
    %v195 = vunpack.c.l.s4 1966171168
    %v196 = vunpack.c.0.s8 %v195
    %v197 = vlaneseq
    %v198 = vshrl.u32 %v197, 7
    %v199 = vsub.s32 %v196, %v198
    %v200 = vrot.slane %v178, %v199
    %v202 = vunpack.c.l.s4 1966171168
    %v203 = vunpack.c.0.s8 %v202
    %v204 = vlaneseq
    %v205 = vshrl.u32 %v204, 7
    %v206 = vsub.s32 %v203, %v205
    %v207 = vrot.slane %v179, %v206
    %v208 = vcombine.high %v186, %v186
    %v209 = vcombine.high %v193, %v193
    %v210 = vcombine.high %v200, %v200
    %v211 = vcombine.high %v207, %v207
    %v212 = vcombine.high %v158, %v158
    %v214 = vunpack.c.l.s4 1966171168
    %v215 = vunpack.c.0.s8 %v214
    %v216 = vlaneseq
    %v217 = vshrl.u32 %v216, 7
    %v218 = vsub.s32 %v215, %v217
    %v219 = vrot.slane %v158, %v218
    %v221 = vunpack.c.l.s4 1966171168
    %v222 = vunpack.c.0.s8 %v221
    %v223 = vlaneseq
    %v224 = vshrl.u32 %v223, 7
    %v225 = vsub.s32 %v222, %v224
    %v226 = vrot.slane %v212, %v225
    %v227 = vcombine.high %v219, %v219
    %v228 = vcombine.high %v226, %v226
    %v230 = vunpack.c.l.s4 1966171168
    %v231 = vunpack.c.0.s8 %v230
    %v232 = vlaneseq
    %v233 = vshrl.u32 %v232, 7
    %v234 = vsub.s32 %v231, %v233
    %v235 = vrot.slane %v219, %v234
    %v237 = vunpack.c.l.s4 1966171168
    %v238 = vunpack.c.0.s8 %v237
    %v239 = vlaneseq
    %v240 = vshrl.u32 %v239, 7
    %v241 = vsub.s32 %v238, %v240
    %v242 = vrot.slane %v226, %v241
    %v244 = vunpack.c.l.s4 1966171168
    %v245 = vunpack.c.0.s8 %v244
    %v246 = vlaneseq
    %v247 = vshrl.u32 %v246, 7
    %v248 = vsub.s32 %v245, %v247
    %v249 = vrot.slane %v227, %v248
    %v251 = vunpack.c.l.s4 1966171168
    %v252 = vunpack.c.0.s8 %v251
    %v253 = vlaneseq
    %v254 = vshrl.u32 %v253, 7
    %v255 = vsub.s32 %v252, %v254
    %v256 = vrot.slane %v228, %v255
    %v257 = vcombine.high %v235, %v235
    %v258 = vcombine.high %v242, %v242
    %v259 = vcombine.high %v249, %v249
    %v260 = vcombine.high %v256, %v256
    %v261 = vlaneseq
    %v262 = vshrl.u32 %v261, 7
    %v263 = vsub.s32 0, %v262
    %v264 = vrot.slane %v186, %v263
    %v265 = vlaneseq
    %v266 = vshrl.u32 %v265, 7
    %v267 = vsub.s32 0, %v266
    %v268 = vrot.slane %v200, %v267
    %v269 = vlaneseq
    %v270 = vshrl.u32 %v269, 7
    %v271 = vsub.s32 0, %v270
    %v272 = vrot.slane %v208, %v271
    %v273 = vlaneseq
    %v274 = vshrl.u32 %v273, 7
    %v275 = vsub.s32 0, %v274
    %v276 = vrot.slane %v210, %v275
    %v277 = vlaneseq
    %v278 = vshrl.u32 %v277, 7
    %v279 = vsub.s32 0, %v278
    %v280 = vrot.slane %v193, %v279
    %v281 = vlaneseq
    %v282 = vshrl.u32 %v281, 7
    %v283 = vsub.s32 0, %v282
    %v284 = vrot.slane %v207, %v283
    %v285 = vlaneseq
    %v286 = vshrl.u32 %v285, 7
    %v287 = vsub.s32 0, %v286
    %v288 = vrot.slane %v209, %v287
    %v289 = vlaneseq
    %v290 = vshrl.u32 %v289, 7
    %v291 = vsub.s32 0, %v290
    %v292 = vrot.slane %v211, %v291
    %v293 = vlaneseq
    %v294 = vshrl.u32 %v293, 7
    %v295 = vsub.s32 0, %v294
    %v296 = vrot.slane %v235, %v295
    %v297 = vlaneseq
    %v298 = vshrl.u32 %v297, 7
    %v299 = vsub.s32 0, %v298
    %v300 = vrot.slane %v249, %v299
    %v301 = vlaneseq
    %v302 = vshrl.u32 %v301, 7
    %v303 = vsub.s32 0, %v302
    %v304 = vrot.slane %v257, %v303
    %v305 = vlaneseq
    %v306 = vshrl.u32 %v305, 7
    %v307 = vsub.s32 0, %v306
    %v308 = vrot.slane %v259, %v307
    %v309 = vlaneseq
    %v310 = vshrl.u32 %v309, 7
    %v311 = vsub.s32 0, %v310
    %v312 = vrot.slane %v242, %v311
    %v313 = vlaneseq
    %v314 = vshrl.u32 %v313, 7
    %v315 = vsub.s32 0, %v314
    %v316 = vrot.slane %v256, %v315
    %v317 = vlaneseq
    %v318 = vshrl.u32 %v317, 7
    %v319 = vsub.s32 0, %v318
    %v320 = vrot.slane %v258, %v319
    %v321 = vlaneseq
    %v322 = vshrl.u32 %v321, 7
    %v323 = vsub.s32 0, %v322
    %v324 = vrot.slane %v260, %v323
    %341 = vrot.lane.b32.xlu0 %v153, 96
    %v342 = vpop.permute.xlu0 %341
    %343 = vrot.lane.b32.xlu0 %v158, 96
    %v344 = vpop.permute.xlu0 %343
    %v347 = vmul.f32 %v264, %v342
    %v348 = vmul.f32 %v268, %v342
    %v349 = vmul.f32 %v272, %v342
    %v350 = vmul.f32 %v276, %v342
    %v351 = vmul.f32 %v280, %v342
    %v352 = vmul.f32 %v284, %v342
    %v353 = vmul.f32 %v288, %v342
    %v354 = vmul.f32 %v292, %v342
    %v355 = vmul.f32 %v296, %v344
    %v356 = vmul.f32 %v300, %v344
    %v357 = vmul.f32 %v304, %v344
    %v358 = vmul.f32 %v308, %v344
    %v359 = vmul.f32 %v312, %v344
    %v360 = vmul.f32 %v316, %v344
    %v361 = vmul.f32 %v320, %v344
    %v362 = vmul.f32 %v324, %v344
    %v363 = vsel %vm79, %v347, -inf
    %v364 = vrot.slane %v363, 4
    %v365 = vmax.f32 %v363, %v364
    %v366 = vrot.slane %v365, 2
    %v367 = vmax.f32 %v365, %v366
    %v368 = vrot.slane %v367, 1
    %v369 = vmax.f32 %v367, %v368
    %v370 = vsel %vm79, %v348, -inf
    %v371 = vrot.slane %v370, 4
    %v372 = vmax.f32 %v370, %v371
    %v373 = vrot.slane %v372, 2
    %v374 = vmax.f32 %v372, %v373
    %v375 = vrot.slane %v374, 1
    %v376 = vmax.f32 %v374, %v375
    %v377 = vsel %vm79, %v349, -inf
    %v378 = vrot.slane %v377, 4
    %v379 = vmax.f32 %v377, %v378
    %v380 = vrot.slane %v379, 2
    %v381 = vmax.f32 %v379, %v380
    %v382 = vrot.slane %v381, 1
    %v383 = vmax.f32 %v381, %v382
    %v384 = vsel %vm79, %v350, -inf
    %v385 = vrot.slane %v384, 4
    %v386 = vmax.f32 %v384, %v385
    %v387 = vrot.slane %v386, 2
    %v388 = vmax.f32 %v386, %v387
    %v389 = vrot.slane %v388, 1
    %v390 = vmax.f32 %v388, %v389
    %v391 = vsel %vm79, %v351, -inf
    %v392 = vrot.slane %v391, 4
    %v393 = vmax.f32 %v391, %v392
    %v394 = vrot.slane %v393, 2
    %v395 = vmax.f32 %v393, %v394
    %v396 = vrot.slane %v395, 1
    %v397 = vmax.f32 %v395, %v396
    %v398 = vsel %vm79, %v352, -inf
    %v399 = vrot.slane %v398, 4
    %v400 = vmax.f32 %v398, %v399
    %v401 = vrot.slane %v400, 2
    %v402 = vmax.f32 %v400, %v401
    %v403 = vrot.slane %v402, 1
    %v404 = vmax.f32 %v402, %v403
    %v405 = vsel %vm79, %v353, -inf
    %v406 = vrot.slane %v405, 4
    %v407 = vmax.f32 %v405, %v406
    %v408 = vrot.slane %v407, 2
    %v409 = vmax.f32 %v407, %v408
    %v410 = vrot.slane %v409, 1
    %v411 = vmax.f32 %v409, %v410
    %v412 = vsel %vm79, %v354, -inf
    %v413 = vrot.slane %v412, 4
    %v414 = vmax.f32 %v412, %v413
    %v415 = vrot.slane %v414, 2
    %v416 = vmax.f32 %v414, %v415
    %v417 = vrot.slane %v416, 1
    %v418 = vmax.f32 %v416, %v417
    %v419 = vsel %vm79, %v355, -inf
    %v420 = vrot.slane %v419, 4
    %v421 = vmax.f32 %v419, %v420
    %v422 = vrot.slane %v421, 2
    %v423 = vmax.f32 %v421, %v422
    %v424 = vrot.slane %v423, 1
    %v425 = vmax.f32 %v423, %v424
    %v426 = vsel %vm79, %v356, -inf
    %v427 = vrot.slane %v426, 4
    %v428 = vmax.f32 %v426, %v427
    %v429 = vrot.slane %v428, 2
    %v430 = vmax.f32 %v428, %v429
    %v431 = vrot.slane %v430, 1
    %v432 = vmax.f32 %v430, %v431
    %v433 = vsel %vm79, %v357, -inf
    %v434 = vrot.slane %v433, 4
    %v435 = vmax.f32 %v433, %v434
    %v436 = vrot.slane %v435, 2
    %v437 = vmax.f32 %v435, %v436
    %v438 = vrot.slane %v437, 1
    %v439 = vmax.f32 %v437, %v438
    %v440 = vsel %vm79, %v358, -inf
    %v441 = vrot.slane %v440, 4
    %v442 = vmax.f32 %v440, %v441
    %v443 = vrot.slane %v442, 2
    %v444 = vmax.f32 %v442, %v443
    %v445 = vrot.slane %v444, 1
    %v446 = vmax.f32 %v444, %v445
    %v447 = vsel %vm79, %v359, -inf
    %v448 = vrot.slane %v447, 4
    %v449 = vmax.f32 %v447, %v448
    %v450 = vrot.slane %v449, 2
    %v451 = vmax.f32 %v449, %v450
    %v452 = vrot.slane %v451, 1
    %v453 = vmax.f32 %v451, %v452
    %v454 = vsel %vm79, %v360, -inf
    %v455 = vrot.slane %v454, 4
    %v456 = vmax.f32 %v454, %v455
    %v457 = vrot.slane %v456, 2
    %v458 = vmax.f32 %v456, %v457
    %v459 = vrot.slane %v458, 1
    %v460 = vmax.f32 %v458, %v459
    %v461 = vsel %vm79, %v361, -inf
    %v462 = vrot.slane %v461, 4
    %v463 = vmax.f32 %v461, %v462
    %v464 = vrot.slane %v463, 2
    %v465 = vmax.f32 %v463, %v464
    %v466 = vrot.slane %v465, 1
    %v467 = vmax.f32 %v465, %v466
    %v468 = vsel %vm79, %v362, -inf
    %v469 = vrot.slane %v468, 4
    %v470 = vmax.f32 %v468, %v469
    %v471 = vrot.slane %v470, 2
    %v472 = vmax.f32 %v470, %v471
    %v473 = vrot.slane %v472, 1
    %v474 = vmax.f32 %v472, %v473
    %v475 = vsub.f32 %v347, %v369
    %v476 = vsub.f32 %v348, %v376
    %v477 = vsub.f32 %v349, %v383
    %v478 = vsub.f32 %v350, %v390
    %v479 = vsub.f32 %v351, %v397
    %v480 = vsub.f32 %v352, %v404
    %v481 = vsub.f32 %v353, %v411
    %v482 = vsub.f32 %v354, %v418
    %v483 = vsub.f32 %v355, %v425
    %v484 = vsub.f32 %v356, %v432
    %v485 = vsub.f32 %v357, %v439
    %v486 = vsub.f32 %v358, %v446
    %v487 = vsub.f32 %v359, %v453
    %v488 = vsub.f32 %v360, %v460
    %v489 = vsub.f32 %v361, %v467
    %v490 = vsub.f32 %v362, %v474
    %v491 = vmul.f32 %v475, 1.442695
    %v492 = vpow.pop %v491
    %v493 = vmul.f32 %v476, 1.442695
    %v494 = vpow.pop %v493
    %v495 = vmul.f32 %v477, 1.442695
    %v496 = vpow.pop %v495
    %v497 = vmul.f32 %v478, 1.442695
    %v498 = vpow.pop %v497
    %v499 = vmul.f32 %v479, 1.442695
    %v500 = vpow.pop %v499
    %v501 = vmul.f32 %v480, 1.442695
    %v502 = vpow.pop %v501
    %v503 = vmul.f32 %v481, 1.442695
    %v504 = vpow.pop %v503
    %v505 = vmul.f32 %v482, 1.442695
    %v506 = vpow.pop %v505
    %v507 = vmul.f32 %v483, 1.442695
    %v508 = vpow.pop %v507
    %v509 = vmul.f32 %v484, 1.442695
    %v510 = vpow.pop %v509
    %v511 = vmul.f32 %v485, 1.442695
    %v512 = vpow.pop %v511
    %v513 = vmul.f32 %v486, 1.442695
    %v514 = vpow.pop %v513
    %v515 = vmul.f32 %v487, 1.442695
    %v516 = vpow.pop %v515
    %v517 = vmul.f32 %v488, 1.442695
    %v518 = vpow.pop %v517
    %v519 = vmul.f32 %v489, 1.442695
    %v520 = vpow.pop %v519
    %v521 = vmul.f32 %v490, 1.442695
    %v522 = vpow.pop %v521
    %v523 = vsel %vm79, %v492, 0.0
    %v524 = vrot.slane %v523, 4
    %v525 = vadd.f32 %v523, %v524
    %v526 = vrot.slane %v525, 2
    %v527 = vadd.f32 %v525, %v526
    %v528 = vrot.slane %v527, 1
    %v529 = vadd.f32 %v527, %v528
    %v530 = vsel %vm79, %v494, 0.0
    %v531 = vrot.slane %v530, 4
    %v532 = vadd.f32 %v530, %v531
    %v533 = vrot.slane %v532, 2
    %v534 = vadd.f32 %v532, %v533
    %v535 = vrot.slane %v534, 1
    %v536 = vadd.f32 %v534, %v535
    %v537 = vsel %vm79, %v496, 0.0
    %v538 = vrot.slane %v537, 4
    %v539 = vadd.f32 %v537, %v538
    %v540 = vrot.slane %v539, 2
    %v541 = vadd.f32 %v539, %v540
    %v542 = vrot.slane %v541, 1
    %v543 = vadd.f32 %v541, %v542
    %v544 = vsel %vm79, %v498, 0.0
    %v545 = vrot.slane %v544, 4
    %v546 = vadd.f32 %v544, %v545
    %v547 = vrot.slane %v546, 2
    %v548 = vadd.f32 %v546, %v547
    %v549 = vrot.slane %v548, 1
    %v550 = vadd.f32 %v548, %v549
    %v551 = vsel %vm79, %v500, 0.0
    %v552 = vrot.slane %v551, 4
    %v553 = vadd.f32 %v551, %v552
    %v554 = vrot.slane %v553, 2
    %v555 = vadd.f32 %v553, %v554
    %v556 = vrot.slane %v555, 1
    %v557 = vadd.f32 %v555, %v556
    %v558 = vsel %vm79, %v502, 0.0
    %v559 = vrot.slane %v558, 4
    %v560 = vadd.f32 %v558, %v559
    %v561 = vrot.slane %v560, 2
    %v562 = vadd.f32 %v560, %v561
    %v563 = vrot.slane %v562, 1
    %v564 = vadd.f32 %v562, %v563
    %v565 = vsel %vm79, %v504, 0.0
    %v566 = vrot.slane %v565, 4
    %v567 = vadd.f32 %v565, %v566
    %v568 = vrot.slane %v567, 2
    %v569 = vadd.f32 %v567, %v568
    %v570 = vrot.slane %v569, 1
    %v571 = vadd.f32 %v569, %v570
    %v572 = vsel %vm79, %v506, 0.0
    %v573 = vrot.slane %v572, 4
    %v574 = vadd.f32 %v572, %v573
    %v575 = vrot.slane %v574, 2
    %v576 = vadd.f32 %v574, %v575
    %v577 = vrot.slane %v576, 1
    %v578 = vadd.f32 %v576, %v577
    %v579 = vsel %vm79, %v508, 0.0
    %v580 = vrot.slane %v579, 4
    %v581 = vadd.f32 %v579, %v580
    %v582 = vrot.slane %v581, 2
    %v583 = vadd.f32 %v581, %v582
    %v584 = vrot.slane %v583, 1
    %v585 = vadd.f32 %v583, %v584
    %v586 = vsel %vm79, %v510, 0.0
    %v587 = vrot.slane %v586, 4
    %v588 = vadd.f32 %v586, %v587
    %v589 = vrot.slane %v588, 2
    %v590 = vadd.f32 %v588, %v589
    %v591 = vrot.slane %v590, 1
    %v592 = vadd.f32 %v590, %v591
    %v593 = vsel %vm79, %v512, 0.0
    %v594 = vrot.slane %v593, 4
    %v595 = vadd.f32 %v593, %v594
    %v596 = vrot.slane %v595, 2
    %v597 = vadd.f32 %v595, %v596
    %v598 = vrot.slane %v597, 1
    %v599 = vadd.f32 %v597, %v598
    %v600 = vsel %vm79, %v514, 0.0
    %v601 = vrot.slane %v600, 4
    %v602 = vadd.f32 %v600, %v601
    %v603 = vrot.slane %v602, 2
    %v604 = vadd.f32 %v602, %v603
    %v605 = vrot.slane %v604, 1
    %v606 = vadd.f32 %v604, %v605
    %v607 = vsel %vm79, %v516, 0.0
    %v608 = vrot.slane %v607, 4
    %v609 = vadd.f32 %v607, %v608
    %v610 = vrot.slane %v609, 2
    %v611 = vadd.f32 %v609, %v610
    %v612 = vrot.slane %v611, 1
    %v613 = vadd.f32 %v611, %v612
    %v614 = vsel %vm79, %v518, 0.0
    %v615 = vrot.slane %v614, 4
    %v616 = vadd.f32 %v614, %v615
    %v617 = vrot.slane %v616, 2
    %v618 = vadd.f32 %v616, %v617
    %v619 = vrot.slane %v618, 1
    %v620 = vadd.f32 %v618, %v619
    %v621 = vsel %vm79, %v520, 0.0
    %v622 = vrot.slane %v621, 4
    %v623 = vadd.f32 %v621, %v622
    %v624 = vrot.slane %v623, 2
    %v625 = vadd.f32 %v623, %v624
    %v626 = vrot.slane %v625, 1
    %v627 = vadd.f32 %v625, %v626
    %v628 = vsel %vm79, %v522, 0.0
    %v629 = vrot.slane %v628, 4
    %v630 = vadd.f32 %v628, %v629
    %v631 = vrot.slane %v630, 2
    %v632 = vadd.f32 %v630, %v631
    %v633 = vrot.slane %v632, 1
    %v634 = vadd.f32 %v632, %v633
    %v635 = vrcp.pop %v529
    %v636 = vmul.f32 %v492, %v635
    %v637 = vrcp.pop %v536
    %v638 = vmul.f32 %v494, %v637
    %v639 = vrcp.pop %v543
    %v640 = vmul.f32 %v496, %v639
    %v641 = vrcp.pop %v550
    %v642 = vmul.f32 %v498, %v641
    %v643 = vrcp.pop %v557
    %v644 = vmul.f32 %v500, %v643
    %v645 = vrcp.pop %v564
    %v646 = vmul.f32 %v502, %v645
    %v647 = vrcp.pop %v571
    %v648 = vmul.f32 %v504, %v647
    %v649 = vrcp.pop %v578
    %v650 = vmul.f32 %v506, %v649
    %v651 = vrcp.pop %v585
    %v652 = vmul.f32 %v508, %v651
    %v653 = vrcp.pop %v592
    %v654 = vmul.f32 %v510, %v653
    %v655 = vrcp.pop %v599
    %v656 = vmul.f32 %v512, %v655
    %v657 = vrcp.pop %v606
    %v658 = vmul.f32 %v514, %v657
    %v659 = vrcp.pop %v613
    %v660 = vmul.f32 %v516, %v659
    %v661 = vrcp.pop %v620
    %v662 = vmul.f32 %v518, %v661
    %v663 = vrcp.pop %v627
    %v664 = vmul.f32 %v520, %v663
    %v665 = vrcp.pop %v634
    %v666 = vmul.f32 %v522, %v665
    %667 = vrot.lane.b32.xlu0 %v153, 64
    %v668 = vpop.permute.xlu0 %667
    %669 = vrot.lane.b32.xlu0 %v158, 64
    %v670 = vpop.permute.xlu0 %669
    %v673 = vmul.f32 %v636, %v668
    %v674 = vmul.f32 %v638, %v668
    %v675 = vmul.f32 %v640, %v668
    %v676 = vmul.f32 %v642, %v668
    %v677 = vmul.f32 %v644, %v668
    %v678 = vmul.f32 %v646, %v668
    %v679 = vmul.f32 %v648, %v668
    %v680 = vmul.f32 %v650, %v668
    %v681 = vmul.f32 %v652, %v670
    %v682 = vmul.f32 %v654, %v670
    %v683 = vmul.f32 %v656, %v670
    %v684 = vmul.f32 %v658, %v670
    %v685 = vmul.f32 %v660, %v670
    %v686 = vmul.f32 %v662, %v670
    %v687 = vmul.f32 %v664, %v670
    %v688 = vmul.f32 %v666, %v670
    %v689 = vsel %vm79, %v673, 0.0
    %v690 = vrot.slane %v689, 4
    %v691 = vadd.f32 %v689, %v690
    %v692 = vrot.slane %v691, 2
    %v693 = vadd.f32 %v691, %v692
    %v694 = vrot.slane %v693, 1
    %v695 = vadd.f32 %v693, %v694
    %v696 = vsel %vm79, %v674, 0.0
    %v697 = vrot.slane %v696, 4
    %v698 = vadd.f32 %v696, %v697
    %v699 = vrot.slane %v698, 2
    %v700 = vadd.f32 %v698, %v699
    %v701 = vrot.slane %v700, 1
    %v702 = vadd.f32 %v700, %v701
    %v703 = vsel %vm79, %v675, 0.0
    %v704 = vrot.slane %v703, 4
    %v705 = vadd.f32 %v703, %v704
    %v706 = vrot.slane %v705, 2
    %v707 = vadd.f32 %v705, %v706
    %v708 = vrot.slane %v707, 1
    %v709 = vadd.f32 %v707, %v708
    %v710 = vsel %vm79, %v676, 0.0
    %v711 = vrot.slane %v710, 4
    %v712 = vadd.f32 %v710, %v711
    %v713 = vrot.slane %v712, 2
    %v714 = vadd.f32 %v712, %v713
    %v715 = vrot.slane %v714, 1
    %v716 = vadd.f32 %v714, %v715
    %v717 = vsel %vm79, %v677, 0.0
    %v718 = vrot.slane %v717, 4
    %v719 = vadd.f32 %v717, %v718
    %v720 = vrot.slane %v719, 2
    %v721 = vadd.f32 %v719, %v720
    %v722 = vrot.slane %v721, 1
    %v723 = vadd.f32 %v721, %v722
    %v724 = vsel %vm79, %v678, 0.0
    %v725 = vrot.slane %v724, 4
    %v726 = vadd.f32 %v724, %v725
    %v727 = vrot.slane %v726, 2
    %v728 = vadd.f32 %v726, %v727
    %v729 = vrot.slane %v728, 1
    %v730 = vadd.f32 %v728, %v729
    %v731 = vsel %vm79, %v679, 0.0
    %v732 = vrot.slane %v731, 4
    %v733 = vadd.f32 %v731, %v732
    %v734 = vrot.slane %v733, 2
    %v735 = vadd.f32 %v733, %v734
    %v736 = vrot.slane %v735, 1
    %v737 = vadd.f32 %v735, %v736
    %v738 = vsel %vm79, %v680, 0.0
    %v739 = vrot.slane %v738, 4
    %v740 = vadd.f32 %v738, %v739
    %v741 = vrot.slane %v740, 2
    %v742 = vadd.f32 %v740, %v741
    %v743 = vrot.slane %v742, 1
    %v744 = vadd.f32 %v742, %v743
    %v745 = vsel %vm79, %v681, 0.0
    %v746 = vrot.slane %v745, 4
    %v747 = vadd.f32 %v745, %v746
    %v748 = vrot.slane %v747, 2
    %v749 = vadd.f32 %v747, %v748
    %v750 = vrot.slane %v749, 1
    %v751 = vadd.f32 %v749, %v750
    %v752 = vsel %vm79, %v682, 0.0
    %v753 = vrot.slane %v752, 4
    %v754 = vadd.f32 %v752, %v753
    %v755 = vrot.slane %v754, 2
    %v756 = vadd.f32 %v754, %v755
    %v757 = vrot.slane %v756, 1
    %v758 = vadd.f32 %v756, %v757
    %v759 = vsel %vm79, %v683, 0.0
    %v760 = vrot.slane %v759, 4
    %v761 = vadd.f32 %v759, %v760
    %v762 = vrot.slane %v761, 2
    %v763 = vadd.f32 %v761, %v762
    %v764 = vrot.slane %v763, 1
    %v765 = vadd.f32 %v763, %v764
    %v766 = vsel %vm79, %v684, 0.0
    %v767 = vrot.slane %v766, 4
    %v768 = vadd.f32 %v766, %v767
    %v769 = vrot.slane %v768, 2
    %v770 = vadd.f32 %v768, %v769
    %v771 = vrot.slane %v770, 1
    %v772 = vadd.f32 %v770, %v771
    %v773 = vsel %vm79, %v685, 0.0
    %v774 = vrot.slane %v773, 4
    %v775 = vadd.f32 %v773, %v774
    %v776 = vrot.slane %v775, 2
    %v777 = vadd.f32 %v775, %v776
    %v778 = vrot.slane %v777, 1
    %v779 = vadd.f32 %v777, %v778
    %v780 = vsel %vm79, %v686, 0.0
    %v781 = vrot.slane %v780, 4
    %v782 = vadd.f32 %v780, %v781
    %v783 = vrot.slane %v782, 2
    %v784 = vadd.f32 %v782, %v783
    %v785 = vrot.slane %v784, 1
    %v786 = vadd.f32 %v784, %v785
    %v787 = vsel %vm79, %v687, 0.0
    %v788 = vrot.slane %v787, 4
    %v789 = vadd.f32 %v787, %v788
    %v790 = vrot.slane %v789, 2
    %v791 = vadd.f32 %v789, %v790
    %v792 = vrot.slane %v791, 1
    %v793 = vadd.f32 %v791, %v792
    %v794 = vsel %vm79, %v688, 0.0
    %v795 = vrot.slane %v794, 4
    %v796 = vadd.f32 %v794, %v795
    %v797 = vrot.slane %v796, 2
    %v798 = vadd.f32 %v796, %v797
    %v799 = vrot.slane %v798, 1
    %v800 = vadd.f32 %v798, %v799
    %v801 = vlaneseq
    %v802 = vshrl.u32 %v801, 7
    %v803 = vsub.s32 1, %v802
    %v804 = vrot.slane %v74, %v803
    %vm821 = vcmask 1041409
    %v822 = vsel %vm821, %v702, %v695
    %vm823 = vcmask 1042434
    %v824 = vsel %vm823, %v709, %v822
    %vm825 = vcmask 1043459
    %v826 = vsel %vm825, %v716, %v824
    %vm827 = vcmask 1044484
    %v828 = vsel %vm827, %v723, %v826
    %vm829 = vcmask 1045509
    %v830 = vsel %vm829, %v730, %v828
    %vm831 = vcmask 1046534
    %v832 = vsel %vm831, %v737, %v830
    %vm833 = vcmask 1047559
    %v834 = vsel %vm833, %v744, %v832
    %v835 = vsel %vm821, %v758, %v751
    %v836 = vsel %vm823, %v765, %v835
    %v837 = vsel %vm825, %v772, %v836
    %v838 = vsel %vm827, %v779, %v837
    %v839 = vsel %vm829, %v786, %v838
    %v840 = vsel %vm831, %v793, %v839
    %v841 = vsel %vm833, %v800, %v840
    %v842 = vsel %vm79, %v834, 0
    %v844 = vsel %vm79, %v841, 0
    %846 = vmatprep.subr.mxu0 0.0
    %847 = vmatpush1.msra.mxu0 0.0
    %848 = vmatprep.subr.mxu0 0.0
    %849 = vmatpush1.msra.mxu0 0.0
    %850 = vmatprep.subr.mxu0 0.0
    %851 = vmatpush1.msra.mxu0 0.0
    %852 = vmatprep.subr.mxu0 0.0
    %853 = vmatpush1.msra.mxu0 0.0
    %854 = vmatprep.subr.mxu0 0.0
    %855 = vmatpush1.msra.mxu0 0.0
    %856 = vmatprep.subr.mxu0 0.0
    %857 = vmatpush1.msra.mxu0 0.0
    %858 = vmatprep.subr.mxu0 0.0
    %859 = vmatpush1.msra.mxu0 0.0
    %860 = vmatprep.subr.mxu0 0.0
    %861 = vmatpush1.msra.mxu0 0.0
    %862 = vmatprep.subr.mxu0 0.0
    %863 = vmatpush1.msra.mxu0 0.0
    %864 = vmatprep.subr.mxu0 0.0
    %865 = vmatpush1.msra.mxu0 0.0
    %866 = vmatprep.subr.mxu0 0.0
    %867 = vmatpush1.msra.mxu0 0.0
    %868 = vmatprep.subr.mxu0 0.0
    %869 = vmatpush1.msra.mxu0 0.0
    %870 = vmatprep.subr.mxu0 0.0
    %871 = vmatpush1.msra.mxu0 %v61
    %872 = vmatprep.subr.mxu0 0.0
    %873 = vmatpush1.msra.mxu0 %v60
    %874 = vmatprep.subr.mxu0 0.0
    %875 = vmatpush1.msra.mxu0 %v59
    %876 = vmatprep.subr.mxu0 0.0
    %877 = vmatpush1.msra.mxu0 %v58
    %878 = vmatprep.subr.mxu0 0.0
    %879 = vmatpush2.msra.mxu0 0.0
    %880 = vmatprep.subr.mxu0 0.0
    %881 = vmatpush2.msra.mxu0 0.0
    %882 = vmatprep.subr.mxu0 0.0
    %883 = vmatpush2.msra.mxu0 0.0
    %884 = vmatprep.subr.mxu0 0.0
    %885 = vmatpush2.msra.mxu0 0.0
    %886 = vmatprep.subr.mxu0 0.0
    %887 = vmatpush2.msra.mxu0 0.0
    %888 = vmatprep.subr.mxu0 0.0
    %889 = vmatpush2.msra.mxu0 0.0
    %890 = vmatprep.subr.mxu0 0.0
    %891 = vmatpush2.msra.mxu0 0.0
    %892 = vmatprep.subr.mxu0 0.0
    %893 = vmatpush2.msra.mxu0 0.0
    %894 = vmatprep.subr.mxu0 0.0
    %895 = vmatpush2.msra.mxu0 0.0
    %896 = vmatprep.subr.mxu0 0.0
    %897 = vmatpush2.msra.mxu0 0.0
    %898 = vmatprep.subr.mxu0 0.0
    %899 = vmatpush2.msra.mxu0 0.0
    %900 = vmatprep.subr.mxu0 0.0
    %901 = vmatpush2.msra.mxu0 0.0
    %902 = vmatprep.subr.mxu0 0.0
    %903 = vmatpush2.msra.mxu0 0.0
    %904 = vmatprep.subr.mxu0 0.0
    %905 = vmatpush2.msra.mxu0 0.0
    %906 = vmatprep.subr.mxu0 0.0
    %907 = vmatpush2.msra.mxu0 0.0
    %908 = vmatprep.subr.mxu0 0.0
    %909 = vmatpush2.msra.mxu0 0.0
    %910 = vmatprep.mubr.f32.mxu0 0.0
    %911 = vmatmul.mubr.f32.gmra.mxu0 %v842
    %v912 = vpop.f32.mrf.mxu0
    %v913 = vadd.f32 %v804, %v912
    %v914 = vpop.f32.mrf.mxu0
    %915 = vmatprep.mubr.f32.mxu0 0.0
    %916 = vmatmul.mubr.f32.gmra.mxu0 %v844
    %v917 = vpop.f32.mrf.mxu0
    %v918 = vadd.f32 %v804, %v917
    %v919 = vpop.f32.mrf.mxu0
    %920 = vdwg.mxu0
    %v921 = vadd.f32 %v52, %v913
    %v922 = vadd.f32 %v53, %v918
    %v923 = vsel %vm79, %v921, 0.0
    %924 = vadd.xlane.f32.xlu0 %v923
    %v925 = vpop.xlane.xlu0 %924
    %v926 = vsel %vm79, %v922, 0.0
    %927 = vadd.xlane.f32.xlu0 %v926
    %v928 = vpop.xlane.xlu0 %927
    %v929 = vrcp.pop 32.0
    %v930 = vmul.f32 %v925, %v929
    %v931 = vmul.f32 %v928, %v929
    %v932 = vsub.f32 %v921, %v930
    %v933 = vsub.f32 %v922, %v931
    %v934 = vmul.f32 %v932, %v932
    %v935 = vmul.f32 %v933, %v933
    %v936 = vsel %vm79, %v934, 0.0
    %937 = vadd.xlane.f32.xlu0 %v936
    %v938 = vpop.xlane.xlu0 %937
    %v939 = vsel %vm79, %v935, 0.0
    %940 = vadd.xlane.f32.xlu0 %v939
    %v941 = vpop.xlane.xlu0 %940
    %v942 = vmul.f32 %v938, %v929
    %v943 = vmul.f32 %v941, %v929
    %v944 = vadd.f32 %v942, 1e-05
    %v945 = vadd.f32 %v943, 1e-05
    %v946 = vrsqrt.pop %v944
    %v947 = vrsqrt.pop %v945
    %v948 = vmul.f32 %v932, %v946
    %v949 = vmul.f32 %v933, %v947
    %v950 = vlaneseq
    %v951 = vshrl.u32 %v950, 7
    %v952 = vsub.s32 2, %v951
    %v953 = vrot.slane %v74, %v952
    %v954 = vmul.f32 %v948, %v953
    %v955 = vmul.f32 %v949, %v953
    %v956 = vlaneseq
    %v957 = vshrl.u32 %v956, 7
    %v958 = vsub.s32 3, %v957
    %v959 = vrot.slane %v74, %v958
    %v960 = vadd.f32 %v954, %v959
    %v961 = vadd.f32 %v955, %v959
    %v962 = vlaneseq
    %v963 = vshrl.u32 %v962, 7
    %v964 = vsub.s32 4, %v963
    %v965 = vrot.slane %v74, %v964
    %v967 = vsel %vm79, %v960, 0
    %v970 = vsel %vm79, %v961, 0
    %972 = vmatprep.subr.mxu0 0.0
    %973 = vmatpush1.msra.mxu0 0.0
    %974 = vmatprep.subr.mxu0 0.0
    %975 = vmatpush1.msra.mxu0 0.0
    %976 = vmatprep.subr.mxu0 0.0
    %977 = vmatpush1.msra.mxu0 0.0
    %978 = vmatprep.subr.mxu0 0.0
    %979 = vmatpush1.msra.mxu0 0.0
    %980 = vmatprep.subr.mxu0 0.0
    %981 = vmatpush1.msra.mxu0 0.0
    %982 = vmatprep.subr.mxu0 0.0
    %983 = vmatpush1.msra.mxu0 0.0
    %984 = vmatprep.subr.mxu0 0.0
    %985 = vmatpush1.msra.mxu0 0.0
    %986 = vmatprep.subr.mxu0 0.0
    %987 = vmatpush1.msra.mxu0 0.0
    %988 = vmatprep.subr.mxu0 0.0
    %989 = vmatpush1.msra.mxu0 0.0
    %990 = vmatprep.subr.mxu0 0.0
    %991 = vmatpush1.msra.mxu0 0.0
    %992 = vmatprep.subr.mxu0 0.0
    %993 = vmatpush1.msra.mxu0 0.0
    %994 = vmatprep.subr.mxu0 0.0
    %995 = vmatpush1.msra.mxu0 0.0
    %996 = vmatprep.subr.mxu0 0.0
    %997 = vmatpush1.msra.mxu0 %v65
    %998 = vmatprep.subr.mxu0 0.0
    %999 = vmatpush1.msra.mxu0 %v64
    %1000 = vmatprep.subr.mxu0 0.0
    %1001 = vmatpush1.msra.mxu0 %v63
    %1002 = vmatprep.subr.mxu0 0.0
    %1003 = vmatpush1.msra.mxu0 %v62
    %1004 = vmatprep.subr.mxu0 0.0
    %1005 = vmatpush2.msra.mxu0 0.0
    %1006 = vmatprep.subr.mxu0 0.0
    %1007 = vmatpush2.msra.mxu0 0.0
    %1008 = vmatprep.subr.mxu0 0.0
    %1009 = vmatpush2.msra.mxu0 0.0
    %1010 = vmatprep.subr.mxu0 0.0
    %1011 = vmatpush2.msra.mxu0 0.0
    %1012 = vmatprep.subr.mxu0 0.0
    %1013 = vmatpush2.msra.mxu0 0.0
    %1014 = vmatprep.subr.mxu0 0.0
    %1015 = vmatpush2.msra.mxu0 0.0
    %1016 = vmatprep.subr.mxu0 0.0
    %1017 = vmatpush2.msra.mxu0 0.0
    %1018 = vmatprep.subr.mxu0 0.0
    %1019 = vmatpush2.msra.mxu0 0.0
    %1020 = vmatprep.subr.mxu0 0.0
    %1021 = vmatpush2.msra.mxu0 0.0
    %1022 = vmatprep.subr.mxu0 0.0
    %1023 = vmatpush2.msra.mxu0 0.0
    %1024 = vmatprep.subr.mxu0 0.0
    %1025 = vmatpush2.msra.mxu0 0.0
    %1026 = vmatprep.subr.mxu0 0.0
    %1027 = vmatpush2.msra.mxu0 0.0
    %1028 = vmatprep.subr.mxu0 0.0
    %1029 = vmatpush2.msra.mxu0 0.0
    %1030 = vmatprep.subr.mxu0 0.0
    %1031 = vmatpush2.msra.mxu0 0.0
    %1032 = vmatprep.subr.mxu0 0.0
    %1033 = vmatpush2.msra.mxu0 0.0
    %1034 = vmatprep.subr.mxu0 0.0
    %1035 = vmatpush2.msra.mxu0 0.0
    %1036 = vmatprep.mubr.f32.mxu0 0.0
    %1037 = vmatmul.mubr.f32.gmra.mxu0 %v967
    %v1038 = vpop.f32.mrf.mxu0
    %v1039 = vadd.f32 %v965, %v1038
    %v1040 = vpop.f32.mrf.mxu0
    %1041 = vmatprep.mubr.f32.mxu0 0.0
    %1042 = vmatmul.mubr.f32.gmra.mxu0 %v970
    %v1043 = vpop.f32.mrf.mxu0
    %v1044 = vadd.f32 %v965, %v1043
    %v1045 = vpop.f32.mrf.mxu0
    %1046 = vdwg.mxu0
    %v1047 = vmax.f32 %v1039, 0.0
    %v1048 = vmax.f32 %v1044, 0.0
    %v1049 = vlaneseq
    %v1050 = vshrl.u32 %v1049, 7
    %v1051 = vsub.s32 5, %v1050
    %v1052 = vrot.slane %v74, %v1051
    %vm1053 = vcmask 523264
    %v1055 = vsel %vm1053, %v1047, 0
    %v1058 = vsel %vm1053, %v1048, 0
    %1060 = vmatprep.subr.mxu0 0.0
    %1061 = vmatpush1.msra.mxu0 0.0
    %1062 = vmatprep.subr.mxu0 0.0
    %1063 = vmatpush1.msra.mxu0 0.0
    %1064 = vmatprep.subr.mxu0 0.0
    %1065 = vmatpush1.msra.mxu0 0.0
    %1066 = vmatprep.subr.mxu0 0.0
    %1067 = vmatpush1.msra.mxu0 0.0
    %1068 = vmatprep.subr.mxu0 0.0
    %1069 = vmatpush1.msra.mxu0 0.0
    %1070 = vmatprep.subr.mxu0 0.0
    %1071 = vmatpush1.msra.mxu0 0.0
    %1072 = vmatprep.subr.mxu0 0.0
    %1073 = vmatpush1.msra.mxu0 0.0
    %1074 = vmatprep.subr.mxu0 0.0
    %1075 = vmatpush1.msra.mxu0 0.0
    %1076 = vmatprep.subr.mxu0 0.0
    %1077 = vmatpush1.msra.mxu0 %v73
    %1078 = vmatprep.subr.mxu0 0.0
    %1079 = vmatpush1.msra.mxu0 %v72
    %1080 = vmatprep.subr.mxu0 0.0
    %1081 = vmatpush1.msra.mxu0 %v71
    %1082 = vmatprep.subr.mxu0 0.0
    %1083 = vmatpush1.msra.mxu0 %v70
    %1084 = vmatprep.subr.mxu0 0.0
    %1085 = vmatpush1.msra.mxu0 %v69
    %1086 = vmatprep.subr.mxu0 0.0
    %1087 = vmatpush1.msra.mxu0 %v68
    %1088 = vmatprep.subr.mxu0 0.0
    %1089 = vmatpush1.msra.mxu0 %v67
    %1090 = vmatprep.subr.mxu0 0.0
    %1091 = vmatpush1.msra.mxu0 %v66
    %1092 = vmatprep.subr.mxu0 0.0
    %1093 = vmatpush2.msra.mxu0 0.0
    %1094 = vmatprep.subr.mxu0 0.0
    %1095 = vmatpush2.msra.mxu0 0.0
    %1096 = vmatprep.subr.mxu0 0.0
    %1097 = vmatpush2.msra.mxu0 0.0
    %1098 = vmatprep.subr.mxu0 0.0
    %1099 = vmatpush2.msra.mxu0 0.0
    %1100 = vmatprep.subr.mxu0 0.0
    %1101 = vmatpush2.msra.mxu0 0.0
    %1102 = vmatprep.subr.mxu0 0.0
    %1103 = vmatpush2.msra.mxu0 0.0
    %1104 = vmatprep.subr.mxu0 0.0
    %1105 = vmatpush2.msra.mxu0 0.0
    %1106 = vmatprep.subr.mxu0 0.0
    %1107 = vmatpush2.msra.mxu0 0.0
    %1108 = vmatprep.subr.mxu0 0.0
    %1109 = vmatpush2.msra.mxu0 0.0
    %1110 = vmatprep.subr.mxu0 0.0
    %1111 = vmatpush2.msra.mxu0 0.0
    %1112 = vmatprep.subr.mxu0 0.0
    %1113 = vmatpush2.msra.mxu0 0.0
    %1114 = vmatprep.subr.mxu0 0.0
    %1115 = vmatpush2.msra.mxu0 0.0
    %1116 = vmatprep.subr.mxu0 0.0
    %1117 = vmatpush2.msra.mxu0 0.0
    %1118 = vmatprep.subr.mxu0 0.0
    %1119 = vmatpush2.msra.mxu0 0.0
    %1120 = vmatprep.subr.mxu0 0.0
    %1121 = vmatpush2.msra.mxu0 0.0
    %1122 = vmatprep.subr.mxu0 0.0
    %1123 = vmatpush2.msra.mxu0 0.0
    %1124 = vmatprep.mubr.f32.mxu0 0.0
    %1125 = vmatmul.mubr.f32.gmra.mxu0 %v1055
    %v1126 = vpop.f32.mrf.mxu0
    %v1127 = vadd.f32 %v1052, %v1126
    %v1128 = vpop.f32.mrf.mxu0
    %1129 = vmatprep.mubr.f32.mxu0 0.0
    %1130 = vmatmul.mubr.f32.gmra.mxu0 %v1058
    %v1131 = vpop.f32.mrf.mxu0
    %v1132 = vadd.f32 %v1052, %v1131
    %v1133 = vpop.f32.mrf.mxu0
    %1134 = vdwg.mxu0
    %v1135 = vadd.f32 %v960, %v1127
    %v1136 = vadd.f32 %v961, %v1132
    %v1137 = vsel %vm79, %v1135, 0.0
    %1138 = vadd.xlane.f32.xlu0 %v1137
    %v1139 = vpop.xlane.xlu0 %1138
    %v1140 = vsel %vm79, %v1136, 0.0
    %1141 = vadd.xlane.f32.xlu0 %v1140
    %v1142 = vpop.xlane.xlu0 %1141
    %v1143 = vmul.f32 %v1139, %v929
    %v1144 = vmul.f32 %v1142, %v929
    %v1145 = vsub.f32 %v1135, %v1143
    %v1146 = vsub.f32 %v1136, %v1144
    %v1147 = vmul.f32 %v1145, %v1145
    %v1148 = vmul.f32 %v1146, %v1146
    %v1149 = vsel %vm79, %v1147, 0.0
    %1150 = vadd.xlane.f32.xlu0 %v1149
    %v1151 = vpop.xlane.xlu0 %1150
    %v1152 = vsel %vm79, %v1148, 0.0
    %1153 = vadd.xlane.f32.xlu0 %v1152
    %v1154 = vpop.xlane.xlu0 %1153
    %v1155 = vmul.f32 %v1151, %v929
    %v1156 = vmul.f32 %v1154, %v929
    %v1157 = vadd.f32 %v1155, 1e-05
    %v1158 = vadd.f32 %v1156, 1e-05
    %v1159 = vrsqrt.pop %v1157
    %v1160 = vrsqrt.pop %v1158
    %v1161 = vmul.f32 %v1145, %v1159
    %v1162 = vmul.f32 %v1146, %v1160
    %v1163 = vlaneseq
    %v1164 = vshrl.u32 %v1163, 7
    %v1165 = vsub.s32 6, %v1164
    %v1166 = vrot.slane %v74, %v1165
    %v1167 = vmul.f32 %v1161, %v1166
    %v1168 = vmul.f32 %v1162, %v1166
    %v1169 = vlaneseq
    %v1170 = vshrl.u32 %v1169, 7
    %v1171 = vsub.s32 7, %v1170
    %v1172 = vrot.slane %v74, %v1171
    %v1173 = vadd.f32 %v1167, %v1172
    %v1174 = vadd.f32 %v1168, %v1172
    %s1175 = scalar_lea.vmem %s1, 32
    %v1176 = vld [vmem:[%s1175] sm:$0xff]
    %v1177 = vld [vmem:[%s1175 + $0x8] sm:$0xff]
    %v1178 = vld [vmem:[%s1175 + $0x10] sm:$0xff]
    %v1179 = vld [vmem:[%s1175 + $0x18] sm:$0xff]
    %s1180 = scalar_lea.vmem %s2, 32
    %v1181 = vld [vmem:[%s1180] sm:$0xff]
    %v1182 = vld [vmem:[%s1180 + $0x8] sm:$0xff]
    %v1183 = vld [vmem:[%s1180 + $0x10] sm:$0xff]
    %v1184 = vld [vmem:[%s1180 + $0x18] sm:$0xff]
    %s1185 = scalar_lea.vmem %s3, 32
    %v1186 = vld [vmem:[%s1185] sm:$0xff]
    %v1187 = vld [vmem:[%s1185 + $0x8] sm:$0xff]
    %v1188 = vld [vmem:[%s1185 + $0x10] sm:$0xff]
    %v1189 = vld [vmem:[%s1185 + $0x18] sm:$0xff]
    %s1190 = scalar_lea.vmem %s4, 64
    %v1191 = vld [vmem:[%s1190] sm:$0xff]
    %v1192 = vld [vmem:[%s1190 + $0x8] sm:$0xff]
    %v1193 = vld [vmem:[%s1190 + $0x10] sm:$0xff]
    %v1194 = vld [vmem:[%s1190 + $0x18] sm:$0xff]
    %v1195 = vld [vmem:[%s1190 + $0x20] sm:$0xff]
    %v1196 = vld [vmem:[%s1190 + $0x28] sm:$0xff]
    %v1197 = vld [vmem:[%s1190 + $0x30] sm:$0xff]
    %v1198 = vld [vmem:[%s1190 + $0x38] sm:$0xff]
    %s1199 = scalar_lea.vmem [#allocation5], 8
    %v1200 = vld [vmem:[%s1199] sm:$0xff]
    %v1201 = vlaneseq
    %v1202 = vshrl.u32 %v1201, 7
    %v1203 = vsub.s32 0, %v1202
    %v1204 = vrot.slane %v1200, %v1203
    %v1206 = vsel %vm79, %v1173, 0
    %v1209 = vsel %vm79, %v1174, 0
    %1211 = vmatprep.subr.mxu0 0.0
    %1212 = vmatpush1.msra.mxu0 0.0
    %1213 = vmatprep.subr.mxu0 0.0
    %1214 = vmatpush1.msra.mxu0 0.0
    %1215 = vmatprep.subr.mxu0 0.0
    %1216 = vmatpush1.msra.mxu0 0.0
    %1217 = vmatprep.subr.mxu0 0.0
    %1218 = vmatpush1.msra.mxu0 0.0
    %1219 = vmatprep.subr.mxu0 0.0
    %1220 = vmatpush1.msra.mxu0 0.0
    %1221 = vmatprep.subr.mxu0 0.0
    %1222 = vmatpush1.msra.mxu0 0.0
    %1223 = vmatprep.subr.mxu0 0.0
    %1224 = vmatpush1.msra.mxu0 0.0
    %1225 = vmatprep.subr.mxu0 0.0
    %1226 = vmatpush1.msra.mxu0 0.0
    %1227 = vmatprep.subr.mxu0 0.0
    %1228 = vmatpush1.msra.mxu0 0.0
    %1229 = vmatprep.subr.mxu0 0.0
    %1230 = vmatpush1.msra.mxu0 0.0
    %1231 = vmatprep.subr.mxu0 0.0
    %1232 = vmatpush1.msra.mxu0 0.0
    %1233 = vmatprep.subr.mxu0 0.0
    %1234 = vmatpush1.msra.mxu0 0.0
    %1235 = vmatprep.subr.mxu0 0.0
    %1236 = vmatpush1.msra.mxu0 %v1179
    %1237 = vmatprep.subr.mxu0 0.0
    %1238 = vmatpush1.msra.mxu0 %v1178
    %1239 = vmatprep.subr.mxu0 0.0
    %1240 = vmatpush1.msra.mxu0 %v1177
    %1241 = vmatprep.subr.mxu0 0.0
    %1242 = vmatpush1.msra.mxu0 %v1176
    %1243 = vmatprep.subr.mxu0 0.0
    %1244 = vmatpush2.msra.mxu0 0.0
    %1245 = vmatprep.subr.mxu0 0.0
    %1246 = vmatpush2.msra.mxu0 0.0
    %1247 = vmatprep.subr.mxu0 0.0
    %1248 = vmatpush2.msra.mxu0 0.0
    %1249 = vmatprep.subr.mxu0 0.0
    %1250 = vmatpush2.msra.mxu0 0.0
    %1251 = vmatprep.subr.mxu0 0.0
    %1252 = vmatpush2.msra.mxu0 0.0
    %1253 = vmatprep.subr.mxu0 0.0
    %1254 = vmatpush2.msra.mxu0 0.0
    %1255 = vmatprep.subr.mxu0 0.0
    %1256 = vmatpush2.msra.mxu0 0.0
    %1257 = vmatprep.subr.mxu0 0.0
    %1258 = vmatpush2.msra.mxu0 0.0
    %1259 = vmatprep.subr.mxu0 0.0
    %1260 = vmatpush2.msra.mxu0 0.0
    %1261 = vmatprep.subr.mxu0 0.0
    %1262 = vmatpush2.msra.mxu0 0.0
    %1263 = vmatprep.subr.mxu0 0.0
    %1264 = vmatpush2.msra.mxu0 0.0
    %1265 = vmatprep.subr.mxu0 0.0
    %1266 = vmatpush2.msra.mxu0 0.0
    %1267 = vmatprep.subr.mxu0 0.0
    %1268 = vmatpush2.msra.mxu0 0.0
    %1269 = vmatprep.subr.mxu0 0.0
    %1270 = vmatpush2.msra.mxu0 0.0
    %1271 = vmatprep.subr.mxu0 0.0
    %1272 = vmatpush2.msra.mxu0 0.0
    %1273 = vmatprep.subr.mxu0 0.0
    %1274 = vmatpush2.msra.mxu0 0.0
    %1275 = vmatprep.mubr.f32.mxu0 0.0
    %1276 = vmatmul.mubr.f32.gmra.mxu0 %v1206
    %v1277 = vpop.f32.mrf.mxu0
    %v1278 = vadd.f32 %v1204, %v1277
    %v1279 = vpop.f32.mrf.mxu0
    %1280 = vmatprep.mubr.f32.mxu0 0.0
    %1281 = vmatmul.mubr.f32.gmra.mxu0 %v1209
    %v1282 = vpop.f32.mrf.mxu0
    %v1283 = vadd.f32 %v1204, %v1282
    %v1284 = vpop.f32.mrf.mxu0
    %1285 = vdwg.mxu0
    %v1288 = vcombine.high %v1278, %v1278
    %v1290 = vunpack.c.l.s4 1966171168
    %v1291 = vunpack.c.0.s8 %v1290
    %v1292 = vlaneseq
    %v1293 = vshrl.u32 %v1292, 7
    %v1294 = vsub.s32 %v1291, %v1293
    %v1295 = vrot.slane %v1278, %v1294
    %v1297 = vunpack.c.l.s4 1966171168
    %v1298 = vunpack.c.0.s8 %v1297
    %v1299 = vlaneseq
    %v1300 = vshrl.u32 %v1299, 7
    %v1301 = vsub.s32 %v1298, %v1300
    %v1302 = vrot.slane %v1288, %v1301
    %v1303 = vcombine.high %v1295, %v1295
    %v1304 = vcombine.high %v1302, %v1302
    %v1306 = vunpack.c.l.s4 1966171168
    %v1307 = vunpack.c.0.s8 %v1306
    %v1308 = vlaneseq
    %v1309 = vshrl.u32 %v1308, 7
    %v1310 = vsub.s32 %v1307, %v1309
    %v1311 = vrot.slane %v1295, %v1310
    %v1313 = vunpack.c.l.s4 1966171168
    %v1314 = vunpack.c.0.s8 %v1313
    %v1315 = vlaneseq
    %v1316 = vshrl.u32 %v1315, 7
    %v1317 = vsub.s32 %v1314, %v1316
    %v1318 = vrot.slane %v1302, %v1317
    %v1320 = vunpack.c.l.s4 1966171168
    %v1321 = vunpack.c.0.s8 %v1320
    %v1322 = vlaneseq
    %v1323 = vshrl.u32 %v1322, 7
    %v1324 = vsub.s32 %v1321, %v1323
    %v1325 = vrot.slane %v1303, %v1324
    %v1327 = vunpack.c.l.s4 1966171168
    %v1328 = vunpack.c.0.s8 %v1327
    %v1329 = vlaneseq
    %v1330 = vshrl.u32 %v1329, 7
    %v1331 = vsub.s32 %v1328, %v1330
    %v1332 = vrot.slane %v1304, %v1331
    %v1333 = vcombine.high %v1311, %v1311
    %v1334 = vcombine.high %v1318, %v1318
    %v1335 = vcombine.high %v1325, %v1325
    %v1336 = vcombine.high %v1332, %v1332
    %v1337 = vcombine.high %v1283, %v1283
    %v1339 = vunpack.c.l.s4 1966171168
    %v1340 = vunpack.c.0.s8 %v1339
    %v1341 = vlaneseq
    %v1342 = vshrl.u32 %v1341, 7
    %v1343 = vsub.s32 %v1340, %v1342
    %v1344 = vrot.slane %v1283, %v1343
    %v1346 = vunpack.c.l.s4 1966171168
    %v1347 = vunpack.c.0.s8 %v1346
    %v1348 = vlaneseq
    %v1349 = vshrl.u32 %v1348, 7
    %v1350 = vsub.s32 %v1347, %v1349
    %v1351 = vrot.slane %v1337, %v1350
    %v1352 = vcombine.high %v1344, %v1344
    %v1353 = vcombine.high %v1351, %v1351
    %v1355 = vunpack.c.l.s4 1966171168
    %v1356 = vunpack.c.0.s8 %v1355
    %v1357 = vlaneseq
    %v1358 = vshrl.u32 %v1357, 7
    %v1359 = vsub.s32 %v1356, %v1358
    %v1360 = vrot.slane %v1344, %v1359
    %v1362 = vunpack.c.l.s4 1966171168
    %v1363 = vunpack.c.0.s8 %v1362
    %v1364 = vlaneseq
    %v1365 = vshrl.u32 %v1364, 7
    %v1366 = vsub.s32 %v1363, %v1365
    %v1367 = vrot.slane %v1351, %v1366
    %v1369 = vunpack.c.l.s4 1966171168
    %v1370 = vunpack.c.0.s8 %v1369
    %v1371 = vlaneseq
    %v1372 = vshrl.u32 %v1371, 7
    %v1373 = vsub.s32 %v1370, %v1372
    %v1374 = vrot.slane %v1352, %v1373
    %v1376 = vunpack.c.l.s4 1966171168
    %v1377 = vunpack.c.0.s8 %v1376
    %v1378 = vlaneseq
    %v1379 = vshrl.u32 %v1378, 7
    %v1380 = vsub.s32 %v1377, %v1379
    %v1381 = vrot.slane %v1353, %v1380
    %v1382 = vcombine.high %v1360, %v1360
    %v1383 = vcombine.high %v1367, %v1367
    %v1384 = vcombine.high %v1374, %v1374
    %v1385 = vcombine.high %v1381, %v1381
    %v1386 = vlaneseq
    %v1387 = vshrl.u32 %v1386, 7
    %v1388 = vsub.s32 0, %v1387
    %v1389 = vrot.slane %v1311, %v1388
    %v1390 = vlaneseq
    %v1391 = vshrl.u32 %v1390, 7
    %v1392 = vsub.s32 0, %v1391
    %v1393 = vrot.slane %v1325, %v1392
    %v1394 = vlaneseq
    %v1395 = vshrl.u32 %v1394, 7
    %v1396 = vsub.s32 0, %v1395
    %v1397 = vrot.slane %v1333, %v1396
    %v1398 = vlaneseq
    %v1399 = vshrl.u32 %v1398, 7
    %v1400 = vsub.s32 0, %v1399
    %v1401 = vrot.slane %v1335, %v1400
    %v1402 = vlaneseq
    %v1403 = vshrl.u32 %v1402, 7
    %v1404 = vsub.s32 0, %v1403
    %v1405 = vrot.slane %v1318, %v1404
    %v1406 = vlaneseq
    %v1407 = vshrl.u32 %v1406, 7
    %v1408 = vsub.s32 0, %v1407
    %v1409 = vrot.slane %v1332, %v1408
    %v1410 = vlaneseq
    %v1411 = vshrl.u32 %v1410, 7
    %v1412 = vsub.s32 0, %v1411
    %v1413 = vrot.slane %v1334, %v1412
    %v1414 = vlaneseq
    %v1415 = vshrl.u32 %v1414, 7
    %v1416 = vsub.s32 0, %v1415
    %v1417 = vrot.slane %v1336, %v1416
    %v1418 = vlaneseq
    %v1419 = vshrl.u32 %v1418, 7
    %v1420 = vsub.s32 0, %v1419
    %v1421 = vrot.slane %v1360, %v1420
    %v1422 = vlaneseq
    %v1423 = vshrl.u32 %v1422, 7
    %v1424 = vsub.s32 0, %v1423
    %v1425 = vrot.slane %v1374, %v1424
    %v1426 = vlaneseq
    %v1427 = vshrl.u32 %v1426, 7
    %v1428 = vsub.s32 0, %v1427
    %v1429 = vrot.slane %v1382, %v1428
    %v1430 = vlaneseq
    %v1431 = vshrl.u32 %v1430, 7
    %v1432 = vsub.s32 0, %v1431
    %v1433 = vrot.slane %v1384, %v1432
    %v1434 = vlaneseq
    %v1435 = vshrl.u32 %v1434, 7
    %v1436 = vsub.s32 0, %v1435
    %v1437 = vrot.slane %v1367, %v1436
    %v1438 = vlaneseq
    %v1439 = vshrl.u32 %v1438, 7
    %v1440 = vsub.s32 0, %v1439
    %v1441 = vrot.slane %v1381, %v1440
    %v1442 = vlaneseq
    %v1443 = vshrl.u32 %v1442, 7
    %v1444 = vsub.s32 0, %v1443
    %v1445 = vrot.slane %v1383, %v1444
    %v1446 = vlaneseq
    %v1447 = vshrl.u32 %v1446, 7
    %v1448 = vsub.s32 0, %v1447
    %v1449 = vrot.slane %v1385, %v1448
    %1466 = vrot.lane.b32.xlu0 %v1278, 96
    %v1467 = vpop.permute.xlu0 %1466
    %1468 = vrot.lane.b32.xlu0 %v1283, 96
    %v1469 = vpop.permute.xlu0 %1468
    %v1472 = vmul.f32 %v1389, %v1467
    %v1473 = vmul.f32 %v1393, %v1467
    %v1474 = vmul.f32 %v1397, %v1467
    %v1475 = vmul.f32 %v1401, %v1467
    %v1476 = vmul.f32 %v1405, %v1467
    %v1477 = vmul.f32 %v1409, %v1467
    %v1478 = vmul.f32 %v1413, %v1467
    %v1479 = vmul.f32 %v1417, %v1467
    %v1480 = vmul.f32 %v1421, %v1469
    %v1481 = vmul.f32 %v1425, %v1469
    %v1482 = vmul.f32 %v1429, %v1469
    %v1483 = vmul.f32 %v1433, %v1469
    %v1484 = vmul.f32 %v1437, %v1469
    %v1485 = vmul.f32 %v1441, %v1469
    %v1486 = vmul.f32 %v1445, %v1469
    %v1487 = vmul.f32 %v1449, %v1469
    %v1488 = vsel %vm79, %v1472, -inf
    %v1489 = vrot.slane %v1488, 4
    %v1490 = vmax.f32 %v1488, %v1489
    %v1491 = vrot.slane %v1490, 2
    %v1492 = vmax.f32 %v1490, %v1491
    %v1493 = vrot.slane %v1492, 1
    %v1494 = vmax.f32 %v1492, %v1493
    %v1495 = vsel %vm79, %v1473, -inf
    %v1496 = vrot.slane %v1495, 4
    %v1497 = vmax.f32 %v1495, %v1496
    %v1498 = vrot.slane %v1497, 2
    %v1499 = vmax.f32 %v1497, %v1498
    %v1500 = vrot.slane %v1499, 1
    %v1501 = vmax.f32 %v1499, %v1500
    %v1502 = vsel %vm79, %v1474, -inf
    %v1503 = vrot.slane %v1502, 4
    %v1504 = vmax.f32 %v1502, %v1503
    %v1505 = vrot.slane %v1504, 2
    %v1506 = vmax.f32 %v1504, %v1505
    %v1507 = vrot.slane %v1506, 1
    %v1508 = vmax.f32 %v1506, %v1507
    %v1509 = vsel %vm79, %v1475, -inf
    %v1510 = vrot.slane %v1509, 4
    %v1511 = vmax.f32 %v1509, %v1510
    %v1512 = vrot.slane %v1511, 2
    %v1513 = vmax.f32 %v1511, %v1512
    %v1514 = vrot.slane %v1513, 1
    %v1515 = vmax.f32 %v1513, %v1514
    %v1516 = vsel %vm79, %v1476, -inf
    %v1517 = vrot.slane %v1516, 4
    %v1518 = vmax.f32 %v1516, %v1517
    %v1519 = vrot.slane %v1518, 2
    %v1520 = vmax.f32 %v1518, %v1519
    %v1521 = vrot.slane %v1520, 1
    %v1522 = vmax.f32 %v1520, %v1521
    %v1523 = vsel %vm79, %v1477, -inf
    %v1524 = vrot.slane %v1523, 4
    %v1525 = vmax.f32 %v1523, %v1524
    %v1526 = vrot.slane %v1525, 2
    %v1527 = vmax.f32 %v1525, %v1526
    %v1528 = vrot.slane %v1527, 1
    %v1529 = vmax.f32 %v1527, %v1528
    %v1530 = vsel %vm79, %v1478, -inf
    %v1531 = vrot.slane %v1530, 4
    %v1532 = vmax.f32 %v1530, %v1531
    %v1533 = vrot.slane %v1532, 2
    %v1534 = vmax.f32 %v1532, %v1533
    %v1535 = vrot.slane %v1534, 1
    %v1536 = vmax.f32 %v1534, %v1535
    %v1537 = vsel %vm79, %v1479, -inf
    %v1538 = vrot.slane %v1537, 4
    %v1539 = vmax.f32 %v1537, %v1538
    %v1540 = vrot.slane %v1539, 2
    %v1541 = vmax.f32 %v1539, %v1540
    %v1542 = vrot.slane %v1541, 1
    %v1543 = vmax.f32 %v1541, %v1542
    %v1544 = vsel %vm79, %v1480, -inf
    %v1545 = vrot.slane %v1544, 4
    %v1546 = vmax.f32 %v1544, %v1545
    %v1547 = vrot.slane %v1546, 2
    %v1548 = vmax.f32 %v1546, %v1547
    %v1549 = vrot.slane %v1548, 1
    %v1550 = vmax.f32 %v1548, %v1549
    %v1551 = vsel %vm79, %v1481, -inf
    %v1552 = vrot.slane %v1551, 4
    %v1553 = vmax.f32 %v1551, %v1552
    %v1554 = vrot.slane %v1553, 2
    %v1555 = vmax.f32 %v1553, %v1554
    %v1556 = vrot.slane %v1555, 1
    %v1557 = vmax.f32 %v1555, %v1556
    %v1558 = vsel %vm79, %v1482, -inf
    %v1559 = vrot.slane %v1558, 4
    %v1560 = vmax.f32 %v1558, %v1559
    %v1561 = vrot.slane %v1560, 2
    %v1562 = vmax.f32 %v1560, %v1561
    %v1563 = vrot.slane %v1562, 1
    %v1564 = vmax.f32 %v1562, %v1563
    %v1565 = vsel %vm79, %v1483, -inf
    %v1566 = vrot.slane %v1565, 4
    %v1567 = vmax.f32 %v1565, %v1566
    %v1568 = vrot.slane %v1567, 2
    %v1569 = vmax.f32 %v1567, %v1568
    %v1570 = vrot.slane %v1569, 1
    %v1571 = vmax.f32 %v1569, %v1570
    %v1572 = vsel %vm79, %v1484, -inf
    %v1573 = vrot.slane %v1572, 4
    %v1574 = vmax.f32 %v1572, %v1573
    %v1575 = vrot.slane %v1574, 2
    %v1576 = vmax.f32 %v1574, %v1575
    %v1577 = vrot.slane %v1576, 1
    %v1578 = vmax.f32 %v1576, %v1577
    %v1579 = vsel %vm79, %v1485, -inf
    %v1580 = vrot.slane %v1579, 4
    %v1581 = vmax.f32 %v1579, %v1580
    %v1582 = vrot.slane %v1581, 2
    %v1583 = vmax.f32 %v1581, %v1582
    %v1584 = vrot.slane %v1583, 1
    %v1585 = vmax.f32 %v1583, %v1584
    %v1586 = vsel %vm79, %v1486, -inf
    %v1587 = vrot.slane %v1586, 4
    %v1588 = vmax.f32 %v1586, %v1587
    %v1589 = vrot.slane %v1588, 2
    %v1590 = vmax.f32 %v1588, %v1589
    %v1591 = vrot.slane %v1590, 1
    %v1592 = vmax.f32 %v1590, %v1591
    %v1593 = vsel %vm79, %v1487, -inf
    %v1594 = vrot.slane %v1593, 4
    %v1595 = vmax.f32 %v1593, %v1594
    %v1596 = vrot.slane %v1595, 2
    %v1597 = vmax.f32 %v1595, %v1596
    %v1598 = vrot.slane %v1597, 1
    %v1599 = vmax.f32 %v1597, %v1598
    %v1600 = vsub.f32 %v1472, %v1494
    %v1601 = vsub.f32 %v1473, %v1501
    %v1602 = vsub.f32 %v1474, %v1508
    %v1603 = vsub.f32 %v1475, %v1515
    %v1604 = vsub.f32 %v1476, %v1522
    %v1605 = vsub.f32 %v1477, %v1529
    %v1606 = vsub.f32 %v1478, %v1536
    %v1607 = vsub.f32 %v1479, %v1543
    %v1608 = vsub.f32 %v1480, %v1550
    %v1609 = vsub.f32 %v1481, %v1557
    %v1610 = vsub.f32 %v1482, %v1564
    %v1611 = vsub.f32 %v1483, %v1571
    %v1612 = vsub.f32 %v1484, %v1578
    %v1613 = vsub.f32 %v1485, %v1585
    %v1614 = vsub.f32 %v1486, %v1592
    %v1615 = vsub.f32 %v1487, %v1599
    %v1616 = vmul.f32 %v1600, 1.442695
    %v1617 = vpow.pop %v1616
    %v1618 = vmul.f32 %v1601, 1.442695
    %v1619 = vpow.pop %v1618
    %v1620 = vmul.f32 %v1602, 1.442695
    %v1621 = vpow.pop %v1620
    %v1622 = vmul.f32 %v1603, 1.442695
    %v1623 = vpow.pop %v1622
    %v1624 = vmul.f32 %v1604, 1.442695
    %v1625 = vpow.pop %v1624
    %v1626 = vmul.f32 %v1605, 1.442695
    %v1627 = vpow.pop %v1626
    %v1628 = vmul.f32 %v1606, 1.442695
    %v1629 = vpow.pop %v1628
    %v1630 = vmul.f32 %v1607, 1.442695
    %v1631 = vpow.pop %v1630
    %v1632 = vmul.f32 %v1608, 1.442695
    %v1633 = vpow.pop %v1632
    %v1634 = vmul.f32 %v1609, 1.442695
    %v1635 = vpow.pop %v1634
    %v1636 = vmul.f32 %v1610, 1.442695
    %v1637 = vpow.pop %v1636
    %v1638 = vmul.f32 %v1611, 1.442695
    %v1639 = vpow.pop %v1638
    %v1640 = vmul.f32 %v1612, 1.442695
    %v1641 = vpow.pop %v1640
    %v1642 = vmul.f32 %v1613, 1.442695
    %v1643 = vpow.pop %v1642
    %v1644 = vmul.f32 %v1614, 1.442695
    %v1645 = vpow.pop %v1644
    %v1646 = vmul.f32 %v1615, 1.442695
    %v1647 = vpow.pop %v1646
    %v1648 = vsel %vm79, %v1617, 0.0
    %v1649 = vrot.slane %v1648, 4
    %v1650 = vadd.f32 %v1648, %v1649
    %v1651 = vrot.slane %v1650, 2
    %v1652 = vadd.f32 %v1650, %v1651
    %v1653 = vrot.slane %v1652, 1
    %v1654 = vadd.f32 %v1652, %v1653
    %v1655 = vsel %vm79, %v1619, 0.0
    %v1656 = vrot.slane %v1655, 4
    %v1657 = vadd.f32 %v1655, %v1656
    %v1658 = vrot.slane %v1657, 2
    %v1659 = vadd.f32 %v1657, %v1658
    %v1660 = vrot.slane %v1659, 1
    %v1661 = vadd.f32 %v1659, %v1660
    %v1662 = vsel %vm79, %v1621, 0.0
    %v1663 = vrot.slane %v1662, 4
    %v1664 = vadd.f32 %v1662, %v1663
    %v1665 = vrot.slane %v1664, 2
    %v1666 = vadd.f32 %v1664, %v1665
    %v1667 = vrot.slane %v1666, 1
    %v1668 = vadd.f32 %v1666, %v1667
    %v1669 = vsel %vm79, %v1623, 0.0
    %v1670 = vrot.slane %v1669, 4
    %v1671 = vadd.f32 %v1669, %v1670
    %v1672 = vrot.slane %v1671, 2
    %v1673 = vadd.f32 %v1671, %v1672
    %v1674 = vrot.slane %v1673, 1
    %v1675 = vadd.f32 %v1673, %v1674
    %v1676 = vsel %vm79, %v1625, 0.0
    %v1677 = vrot.slane %v1676, 4
    %v1678 = vadd.f32 %v1676, %v1677
    %v1679 = vrot.slane %v1678, 2
    %v1680 = vadd.f32 %v1678, %v1679
    %v1681 = vrot.slane %v1680, 1
    %v1682 = vadd.f32 %v1680, %v1681
    %v1683 = vsel %vm79, %v1627, 0.0
    %v1684 = vrot.slane %v1683, 4
    %v1685 = vadd.f32 %v1683, %v1684
    %v1686 = vrot.slane %v1685, 2
    %v1687 = vadd.f32 %v1685, %v1686
    %v1688 = vrot.slane %v1687, 1
    %v1689 = vadd.f32 %v1687, %v1688
    %v1690 = vsel %vm79, %v1629, 0.0
    %v1691 = vrot.slane %v1690, 4
    %v1692 = vadd.f32 %v1690, %v1691
    %v1693 = vrot.slane %v1692, 2
    %v1694 = vadd.f32 %v1692, %v1693
    %v1695 = vrot.slane %v1694, 1
    %v1696 = vadd.f32 %v1694, %v1695
    %v1697 = vsel %vm79, %v1631, 0.0
    %v1698 = vrot.slane %v1697, 4
    %v1699 = vadd.f32 %v1697, %v1698
    %v1700 = vrot.slane %v1699, 2
    %v1701 = vadd.f32 %v1699, %v1700
    %v1702 = vrot.slane %v1701, 1
    %v1703 = vadd.f32 %v1701, %v1702
    %v1704 = vsel %vm79, %v1633, 0.0
    %v1705 = vrot.slane %v1704, 4
    %v1706 = vadd.f32 %v1704, %v1705
    %v1707 = vrot.slane %v1706, 2
    %v1708 = vadd.f32 %v1706, %v1707
    %v1709 = vrot.slane %v1708, 1
    %v1710 = vadd.f32 %v1708, %v1709
    %v1711 = vsel %vm79, %v1635, 0.0
    %v1712 = vrot.slane %v1711, 4
    %v1713 = vadd.f32 %v1711, %v1712
    %v1714 = vrot.slane %v1713, 2
    %v1715 = vadd.f32 %v1713, %v1714
    %v1716 = vrot.slane %v1715, 1
    %v1717 = vadd.f32 %v1715, %v1716
    %v1718 = vsel %vm79, %v1637, 0.0
    %v1719 = vrot.slane %v1718, 4
    %v1720 = vadd.f32 %v1718, %v1719
    %v1721 = vrot.slane %v1720, 2
    %v1722 = vadd.f32 %v1720, %v1721
    %v1723 = vrot.slane %v1722, 1
    %v1724 = vadd.f32 %v1722, %v1723
    %v1725 = vsel %vm79, %v1639, 0.0
    %v1726 = vrot.slane %v1725, 4
    %v1727 = vadd.f32 %v1725, %v1726
    %v1728 = vrot.slane %v1727, 2
    %v1729 = vadd.f32 %v1727, %v1728
    %v1730 = vrot.slane %v1729, 1
    %v1731 = vadd.f32 %v1729, %v1730
    %v1732 = vsel %vm79, %v1641, 0.0
    %v1733 = vrot.slane %v1732, 4
    %v1734 = vadd.f32 %v1732, %v1733
    %v1735 = vrot.slane %v1734, 2
    %v1736 = vadd.f32 %v1734, %v1735
    %v1737 = vrot.slane %v1736, 1
    %v1738 = vadd.f32 %v1736, %v1737
    %v1739 = vsel %vm79, %v1643, 0.0
    %v1740 = vrot.slane %v1739, 4
    %v1741 = vadd.f32 %v1739, %v1740
    %v1742 = vrot.slane %v1741, 2
    %v1743 = vadd.f32 %v1741, %v1742
    %v1744 = vrot.slane %v1743, 1
    %v1745 = vadd.f32 %v1743, %v1744
    %v1746 = vsel %vm79, %v1645, 0.0
    %v1747 = vrot.slane %v1746, 4
    %v1748 = vadd.f32 %v1746, %v1747
    %v1749 = vrot.slane %v1748, 2
    %v1750 = vadd.f32 %v1748, %v1749
    %v1751 = vrot.slane %v1750, 1
    %v1752 = vadd.f32 %v1750, %v1751
    %v1753 = vsel %vm79, %v1647, 0.0
    %v1754 = vrot.slane %v1753, 4
    %v1755 = vadd.f32 %v1753, %v1754
    %v1756 = vrot.slane %v1755, 2
    %v1757 = vadd.f32 %v1755, %v1756
    %v1758 = vrot.slane %v1757, 1
    %v1759 = vadd.f32 %v1757, %v1758
    %v1760 = vrcp.pop %v1654
    %v1761 = vmul.f32 %v1617, %v1760
    %v1762 = vrcp.pop %v1661
    %v1763 = vmul.f32 %v1619, %v1762
    %v1764 = vrcp.pop %v1668
    %v1765 = vmul.f32 %v1621, %v1764
    %v1766 = vrcp.pop %v1675
    %v1767 = vmul.f32 %v1623, %v1766
    %v1768 = vrcp.pop %v1682
    %v1769 = vmul.f32 %v1625, %v1768
    %v1770 = vrcp.pop %v1689
    %v1771 = vmul.f32 %v1627, %v1770
    %v1772 = vrcp.pop %v1696
    %v1773 = vmul.f32 %v1629, %v1772
    %v1774 = vrcp.pop %v1703
    %v1775 = vmul.f32 %v1631, %v1774
    %v1776 = vrcp.pop %v1710
    %v1777 = vmul.f32 %v1633, %v1776
    %v1778 = vrcp.pop %v1717
    %v1779 = vmul.f32 %v1635, %v1778
    %v1780 = vrcp.pop %v1724
    %v1781 = vmul.f32 %v1637, %v1780
    %v1782 = vrcp.pop %v1731
    %v1783 = vmul.f32 %v1639, %v1782
    %v1784 = vrcp.pop %v1738
    %v1785 = vmul.f32 %v1641, %v1784
    %v1786 = vrcp.pop %v1745
    %v1787 = vmul.f32 %v1643, %v1786
    %v1788 = vrcp.pop %v1752
    %v1789 = vmul.f32 %v1645, %v1788
    %v1790 = vrcp.pop %v1759
    %v1791 = vmul.f32 %v1647, %v1790
    %1792 = vrot.lane.b32.xlu0 %v1278, 64
    %v1793 = vpop.permute.xlu0 %1792
    %1794 = vrot.lane.b32.xlu0 %v1283, 64
    %v1795 = vpop.permute.xlu0 %1794
    %v1798 = vmul.f32 %v1761, %v1793
    %v1799 = vmul.f32 %v1763, %v1793
    %v1800 = vmul.f32 %v1765, %v1793
    %v1801 = vmul.f32 %v1767, %v1793
    %v1802 = vmul.f32 %v1769, %v1793
    %v1803 = vmul.f32 %v1771, %v1793
    %v1804 = vmul.f32 %v1773, %v1793
    %v1805 = vmul.f32 %v1775, %v1793
    %v1806 = vmul.f32 %v1777, %v1795
    %v1807 = vmul.f32 %v1779, %v1795
    %v1808 = vmul.f32 %v1781, %v1795
    %v1809 = vmul.f32 %v1783, %v1795
    %v1810 = vmul.f32 %v1785, %v1795
    %v1811 = vmul.f32 %v1787, %v1795
    %v1812 = vmul.f32 %v1789, %v1795
    %v1813 = vmul.f32 %v1791, %v1795
    %v1814 = vsel %vm79, %v1798, 0.0
    %v1815 = vrot.slane %v1814, 4
    %v1816 = vadd.f32 %v1814, %v1815
    %v1817 = vrot.slane %v1816, 2
    %v1818 = vadd.f32 %v1816, %v1817
    %v1819 = vrot.slane %v1818, 1
    %v1820 = vadd.f32 %v1818, %v1819
    %v1821 = vsel %vm79, %v1799, 0.0
    %v1822 = vrot.slane %v1821, 4
    %v1823 = vadd.f32 %v1821, %v1822
    %v1824 = vrot.slane %v1823, 2
    %v1825 = vadd.f32 %v1823, %v1824
    %v1826 = vrot.slane %v1825, 1
    %v1827 = vadd.f32 %v1825, %v1826
    %v1828 = vsel %vm79, %v1800, 0.0
    %v1829 = vrot.slane %v1828, 4
    %v1830 = vadd.f32 %v1828, %v1829
    %v1831 = vrot.slane %v1830, 2
    %v1832 = vadd.f32 %v1830, %v1831
    %v1833 = vrot.slane %v1832, 1
    %v1834 = vadd.f32 %v1832, %v1833
    %v1835 = vsel %vm79, %v1801, 0.0
    %v1836 = vrot.slane %v1835, 4
    %v1837 = vadd.f32 %v1835, %v1836
    %v1838 = vrot.slane %v1837, 2
    %v1839 = vadd.f32 %v1837, %v1838
    %v1840 = vrot.slane %v1839, 1
    %v1841 = vadd.f32 %v1839, %v1840
    %v1842 = vsel %vm79, %v1802, 0.0
    %v1843 = vrot.slane %v1842, 4
    %v1844 = vadd.f32 %v1842, %v1843
    %v1845 = vrot.slane %v1844, 2
    %v1846 = vadd.f32 %v1844, %v1845
    %v1847 = vrot.slane %v1846, 1
    %v1848 = vadd.f32 %v1846, %v1847
    %v1849 = vsel %vm79, %v1803, 0.0
    %v1850 = vrot.slane %v1849, 4
    %v1851 = vadd.f32 %v1849, %v1850
    %v1852 = vrot.slane %v1851, 2
    %v1853 = vadd.f32 %v1851, %v1852
    %v1854 = vrot.slane %v1853, 1
    %v1855 = vadd.f32 %v1853, %v1854
    %v1856 = vsel %vm79, %v1804, 0.0
    %v1857 = vrot.slane %v1856, 4
    %v1858 = vadd.f32 %v1856, %v1857
    %v1859 = vrot.slane %v1858, 2
    %v1860 = vadd.f32 %v1858, %v1859
    %v1861 = vrot.slane %v1860, 1
    %v1862 = vadd.f32 %v1860, %v1861
    %v1863 = vsel %vm79, %v1805, 0.0
    %v1864 = vrot.slane %v1863, 4
    %v1865 = vadd.f32 %v1863, %v1864
    %v1866 = vrot.slane %v1865, 2
    %v1867 = vadd.f32 %v1865, %v1866
    %v1868 = vrot.slane %v1867, 1
    %v1869 = vadd.f32 %v1867, %v1868
    %v1870 = vsel %vm79, %v1806, 0.0
    %v1871 = vrot.slane %v1870, 4
    %v1872 = vadd.f32 %v1870, %v1871
    %v1873 = vrot.slane %v1872, 2
    %v1874 = vadd.f32 %v1872, %v1873
    %v1875 = vrot.slane %v1874, 1
    %v1876 = vadd.f32 %v1874, %v1875
    %v1877 = vsel %vm79, %v1807, 0.0
    %v1878 = vrot.slane %v1877, 4
    %v1879 = vadd.f32 %v1877, %v1878
    %v1880 = vrot.slane %v1879, 2
    %v1881 = vadd.f32 %v1879, %v1880
    %v1882 = vrot.slane %v1881, 1
    %v1883 = vadd.f32 %v1881, %v1882
    %v1884 = vsel %vm79, %v1808, 0.0
    %v1885 = vrot.slane %v1884, 4
    %v1886 = vadd.f32 %v1884, %v1885
    %v1887 = vrot.slane %v1886, 2
    %v1888 = vadd.f32 %v1886, %v1887
    %v1889 = vrot.slane %v1888, 1
    %v1890 = vadd.f32 %v1888, %v1889
    %v1891 = vsel %vm79, %v1809, 0.0
    %v1892 = vrot.slane %v1891, 4
    %v1893 = vadd.f32 %v1891, %v1892
    %v1894 = vrot.slane %v1893, 2
    %v1895 = vadd.f32 %v1893, %v1894
    %v1896 = vrot.slane %v1895, 1
    %v1897 = vadd.f32 %v1895, %v1896
    %v1898 = vsel %vm79, %v1810, 0.0
    %v1899 = vrot.slane %v1898, 4
    %v1900 = vadd.f32 %v1898, %v1899
    %v1901 = vrot.slane %v1900, 2
    %v1902 = vadd.f32 %v1900, %v1901
    %v1903 = vrot.slane %v1902, 1
    %v1904 = vadd.f32 %v1902, %v1903
    %v1905 = vsel %vm79, %v1811, 0.0
    %v1906 = vrot.slane %v1905, 4
    %v1907 = vadd.f32 %v1905, %v1906
    %v1908 = vrot.slane %v1907, 2
    %v1909 = vadd.f32 %v1907, %v1908
    %v1910 = vrot.slane %v1909, 1
    %v1911 = vadd.f32 %v1909, %v1910
    %v1912 = vsel %vm79, %v1812, 0.0
    %v1913 = vrot.slane %v1912, 4
    %v1914 = vadd.f32 %v1912, %v1913
    %v1915 = vrot.slane %v1914, 2
    %v1916 = vadd.f32 %v1914, %v1915
    %v1917 = vrot.slane %v1916, 1
    %v1918 = vadd.f32 %v1916, %v1917
    %v1919 = vsel %vm79, %v1813, 0.0
    %v1920 = vrot.slane %v1919, 4
    %v1921 = vadd.f32 %v1919, %v1920
    %v1922 = vrot.slane %v1921, 2
    %v1923 = vadd.f32 %v1921, %v1922
    %v1924 = vrot.slane %v1923, 1
    %v1925 = vadd.f32 %v1923, %v1924
    %v1926 = vlaneseq
    %v1927 = vshrl.u32 %v1926, 7
    %v1928 = vsub.s32 1, %v1927
    %v1929 = vrot.slane %v1200, %v1928
    %v1946 = vsel %vm821, %v1827, %v1820
    %v1947 = vsel %vm823, %v1834, %v1946
    %v1948 = vsel %vm825, %v1841, %v1947
    %v1949 = vsel %vm827, %v1848, %v1948
    %v1950 = vsel %vm829, %v1855, %v1949
    %v1951 = vsel %vm831, %v1862, %v1950
    %v1952 = vsel %vm833, %v1869, %v1951
    %v1953 = vsel %vm821, %v1883, %v1876
    %v1954 = vsel %vm823, %v1890, %v1953
    %v1955 = vsel %vm825, %v1897, %v1954
    %v1956 = vsel %vm827, %v1904, %v1955
    %v1957 = vsel %vm829, %v1911, %v1956
    %v1958 = vsel %vm831, %v1918, %v1957
    %v1959 = vsel %vm833, %v1925, %v1958
    %v1960 = vsel %vm79, %v1952, 0
    %v1962 = vsel %vm79, %v1959, 0
    %1964 = vmatprep.subr.mxu0 0.0
    %1965 = vmatpush1.msra.mxu0 0.0
    %1966 = vmatprep.subr.mxu0 0.0
    %1967 = vmatpush1.msra.mxu0 0.0
    %1968 = vmatprep.subr.mxu0 0.0
    %1969 = vmatpush1.msra.mxu0 0.0
    %1970 = vmatprep.subr.mxu0 0.0
    %1971 = vmatpush1.msra.mxu0 0.0
    %1972 = vmatprep.subr.mxu0 0.0
    %1973 = vmatpush1.msra.mxu0 0.0
    %1974 = vmatprep.subr.mxu0 0.0
    %1975 = vmatpush1.msra.mxu0 0.0
    %1976 = vmatprep.subr.mxu0 0.0
    %1977 = vmatpush1.msra.mxu0 0.0
    %1978 = vmatprep.subr.mxu0 0.0
    %1979 = vmatpush1.msra.mxu0 0.0
    %1980 = vmatprep.subr.mxu0 0.0
    %1981 = vmatpush1.msra.mxu0 0.0
    %1982 = vmatprep.subr.mxu0 0.0
    %1983 = vmatpush1.msra.mxu0 0.0
    %1984 = vmatprep.subr.mxu0 0.0
    %1985 = vmatpush1.msra.mxu0 0.0
    %1986 = vmatprep.subr.mxu0 0.0
    %1987 = vmatpush1.msra.mxu0 0.0
    %1988 = vmatprep.subr.mxu0 0.0
    %1989 = vmatpush1.msra.mxu0 %v1184
    %1990 = vmatprep.subr.mxu0 0.0
    %1991 = vmatpush1.msra.mxu0 %v1183
    %1992 = vmatprep.subr.mxu0 0.0
    %1993 = vmatpush1.msra.mxu0 %v1182
    %1994 = vmatprep.subr.mxu0 0.0
    %1995 = vmatpush1.msra.mxu0 %v1181
    %1996 = vmatprep.subr.mxu0 0.0
    %1997 = vmatpush2.msra.mxu0 0.0
    %1998 = vmatprep.subr.mxu0 0.0
    %1999 = vmatpush2.msra.mxu0 0.0
    %2000 = vmatprep.subr.mxu0 0.0
    %2001 = vmatpush2.msra.mxu0 0.0
    %2002 = vmatprep.subr.mxu0 0.0
    %2003 = vmatpush2.msra.mxu0 0.0
    %2004 = vmatprep.subr.mxu0 0.0
    %2005 = vmatpush2.msra.mxu0 0.0
    %2006 = vmatprep.subr.mxu0 0.0
    %2007 = vmatpush2.msra.mxu0 0.0
    %2008 = vmatprep.subr.mxu0 0.0
    %2009 = vmatpush2.msra.mxu0 0.0
    %2010 = vmatprep.subr.mxu0 0.0
    %2011 = vmatpush2.msra.mxu0 0.0
    %2012 = vmatprep.subr.mxu0 0.0
    %2013 = vmatpush2.msra.mxu0 0.0
    %2014 = vmatprep.subr.mxu0 0.0
    %2015 = vmatpush2.msra.mxu0 0.0
    %2016 = vmatprep.subr.mxu0 0.0
    %2017 = vmatpush2.msra.mxu0 0.0
    %2018 = vmatprep.subr.mxu0 0.0
    %2019 = vmatpush2.msra.mxu0 0.0
    %2020 = vmatprep.subr.mxu0 0.0
    %2021 = vmatpush2.msra.mxu0 0.0
    %2022 = vmatprep.subr.mxu0 0.0
    %2023 = vmatpush2.msra.mxu0 0.0
    %2024 = vmatprep.subr.mxu0 0.0
    %2025 = vmatpush2.msra.mxu0 0.0
    %2026 = vmatprep.subr.mxu0 0.0
    %2027 = vmatpush2.msra.mxu0 0.0
    %2028 = vmatprep.mubr.f32.mxu0 0.0
    %2029 = vmatmul.mubr.f32.gmra.mxu0 %v1960
    %v2030 = vpop.f32.mrf.mxu0
    %v2031 = vadd.f32 %v1929, %v2030
    %v2032 = vpop.f32.mrf.mxu0
    %2033 = vmatprep.mubr.f32.mxu0 0.0
    %2034 = vmatmul.mubr.f32.gmra.mxu0 %v1962
    %v2035 = vpop.f32.mrf.mxu0
    %v2036 = vadd.f32 %v1929, %v2035
    %v2037 = vpop.f32.mrf.mxu0
    %2038 = vdwg.mxu0
    %v2039 = vadd.f32 %v1173, %v2031
    %v2040 = vadd.f32 %v1174, %v2036
    %v2041 = vsel %vm79, %v2039, 0.0
    %2042 = vadd.xlane.f32.xlu0 %v2041
    %v2043 = vpop.xlane.xlu0 %2042
    %v2044 = vsel %vm79, %v2040, 0.0
    %2045 = vadd.xlane.f32.xlu0 %v2044
    %v2046 = vpop.xlane.xlu0 %2045
    %v2047 = vmul.f32 %v2043, %v929
    %v2048 = vmul.f32 %v2046, %v929
    %v2049 = vsub.f32 %v2039, %v2047
    %v2050 = vsub.f32 %v2040, %v2048
    %v2051 = vmul.f32 %v2049, %v2049
    %v2052 = vmul.f32 %v2050, %v2050
    %v2053 = vsel %vm79, %v2051, 0.0
    %2054 = vadd.xlane.f32.xlu0 %v2053
    %v2055 = vpop.xlane.xlu0 %2054
    %v2056 = vsel %vm79, %v2052, 0.0
    %2057 = vadd.xlane.f32.xlu0 %v2056
    %v2058 = vpop.xlane.xlu0 %2057
    %v2059 = vmul.f32 %v2055, %v929
    %v2060 = vmul.f32 %v2058, %v929
    %v2061 = vadd.f32 %v2059, 1e-05
    %v2062 = vadd.f32 %v2060, 1e-05
    %v2063 = vrsqrt.pop %v2061
    %v2064 = vrsqrt.pop %v2062
    %v2065 = vmul.f32 %v2049, %v2063
    %v2066 = vmul.f32 %v2050, %v2064
    %v2067 = vlaneseq
    %v2068 = vshrl.u32 %v2067, 7
    %v2069 = vsub.s32 2, %v2068
    %v2070 = vrot.slane %v1200, %v2069
    %v2071 = vmul.f32 %v2065, %v2070
    %v2072 = vmul.f32 %v2066, %v2070
    %v2073 = vlaneseq
    %v2074 = vshrl.u32 %v2073, 7
    %v2075 = vsub.s32 3, %v2074
    %v2076 = vrot.slane %v1200, %v2075
    %v2077 = vadd.f32 %v2071, %v2076
    %v2078 = vadd.f32 %v2072, %v2076
    %v2079 = vlaneseq
    %v2080 = vshrl.u32 %v2079, 7
    %v2081 = vsub.s32 4, %v2080
    %v2082 = vrot.slane %v1200, %v2081
    %v2084 = vsel %vm79, %v2077, 0
    %v2087 = vsel %vm79, %v2078, 0
    %2089 = vmatprep.subr.mxu0 0.0
    %2090 = vmatpush1.msra.mxu0 0.0
    %2091 = vmatprep.subr.mxu0 0.0
    %2092 = vmatpush1.msra.mxu0 0.0
    %2093 = vmatprep.subr.mxu0 0.0
    %2094 = vmatpush1.msra.mxu0 0.0
    %2095 = vmatprep.subr.mxu0 0.0
    %2096 = vmatpush1.msra.mxu0 0.0
    %2097 = vmatprep.subr.mxu0 0.0
    %2098 = vmatpush1.msra.mxu0 0.0
    %2099 = vmatprep.subr.mxu0 0.0
    %2100 = vmatpush1.msra.mxu0 0.0
    %2101 = vmatprep.subr.mxu0 0.0
    %2102 = vmatpush1.msra.mxu0 0.0
    %2103 = vmatprep.subr.mxu0 0.0
    %2104 = vmatpush1.msra.mxu0 0.0
    %2105 = vmatprep.subr.mxu0 0.0
    %2106 = vmatpush1.msra.mxu0 0.0
    %2107 = vmatprep.subr.mxu0 0.0
    %2108 = vmatpush1.msra.mxu0 0.0
    %2109 = vmatprep.subr.mxu0 0.0
    %2110 = vmatpush1.msra.mxu0 0.0
    %2111 = vmatprep.subr.mxu0 0.0
    %2112 = vmatpush1.msra.mxu0 0.0
    %2113 = vmatprep.subr.mxu0 0.0
    %2114 = vmatpush1.msra.mxu0 %v1189
    %2115 = vmatprep.subr.mxu0 0.0
    %2116 = vmatpush1.msra.mxu0 %v1188
    %2117 = vmatprep.subr.mxu0 0.0
    %2118 = vmatpush1.msra.mxu0 %v1187
    %2119 = vmatprep.subr.mxu0 0.0
    %2120 = vmatpush1.msra.mxu0 %v1186
    %2121 = vmatprep.subr.mxu0 0.0
    %2122 = vmatpush2.msra.mxu0 0.0
    %2123 = vmatprep.subr.mxu0 0.0
    %2124 = vmatpush2.msra.mxu0 0.0
    %2125 = vmatprep.subr.mxu0 0.0
    %2126 = vmatpush2.msra.mxu0 0.0
    %2127 = vmatprep.subr.mxu0 0.0
    %2128 = vmatpush2.msra.mxu0 0.0
    %2129 = vmatprep.subr.mxu0 0.0
    %2130 = vmatpush2.msra.mxu0 0.0
    %2131 = vmatprep.subr.mxu0 0.0
    %2132 = vmatpush2.msra.mxu0 0.0
    %2133 = vmatprep.subr.mxu0 0.0
    %2134 = vmatpush2.msra.mxu0 0.0
    %2135 = vmatprep.subr.mxu0 0.0
    %2136 = vmatpush2.msra.mxu0 0.0
    %2137 = vmatprep.subr.mxu0 0.0
    %2138 = vmatpush2.msra.mxu0 0.0
    %2139 = vmatprep.subr.mxu0 0.0
    %2140 = vmatpush2.msra.mxu0 0.0
    %2141 = vmatprep.subr.mxu0 0.0
    %2142 = vmatpush2.msra.mxu0 0.0
    %2143 = vmatprep.subr.mxu0 0.0
    %2144 = vmatpush2.msra.mxu0 0.0
    %2145 = vmatprep.subr.mxu0 0.0
    %2146 = vmatpush2.msra.mxu0 0.0
    %2147 = vmatprep.subr.mxu0 0.0
    %2148 = vmatpush2.msra.mxu0 0.0
    %2149 = vmatprep.subr.mxu0 0.0
    %2150 = vmatpush2.msra.mxu0 0.0
    %2151 = vmatprep.subr.mxu0 0.0
    %2152 = vmatpush2.msra.mxu0 0.0
    %2153 = vmatprep.mubr.f32.mxu0 0.0
    %2154 = vmatmul.mubr.f32.gmra.mxu0 %v2084
    %v2155 = vpop.f32.mrf.mxu0
    %v2156 = vadd.f32 %v2082, %v2155
    %v2157 = vpop.f32.mrf.mxu0
    %2158 = vmatprep.mubr.f32.mxu0 0.0
    %2159 = vmatmul.mubr.f32.gmra.mxu0 %v2087
    %v2160 = vpop.f32.mrf.mxu0
    %v2161 = vadd.f32 %v2082, %v2160
    %v2162 = vpop.f32.mrf.mxu0
    %2163 = vdwg.mxu0
    %v2164 = vmax.f32 %v2156, 0.0
    %v2165 = vmax.f32 %v2161, 0.0
    %v2166 = vlaneseq
    %v2167 = vshrl.u32 %v2166, 7
    %v2168 = vsub.s32 5, %v2167
    %v2169 = vrot.slane %v1200, %v2168
    %v2171 = vsel %vm1053, %v2164, 0
    %v2174 = vsel %vm1053, %v2165, 0
    %2176 = vmatprep.subr.mxu0 0.0
    %2177 = vmatpush1.msra.mxu0 0.0
    %2178 = vmatprep.subr.mxu0 0.0
    %2179 = vmatpush1.msra.mxu0 0.0
    %2180 = vmatprep.subr.mxu0 0.0
    %2181 = vmatpush1.msra.mxu0 0.0
    %2182 = vmatprep.subr.mxu0 0.0
    %2183 = vmatpush1.msra.mxu0 0.0
    %2184 = vmatprep.subr.mxu0 0.0
    %2185 = vmatpush1.msra.mxu0 0.0
    %2186 = vmatprep.subr.mxu0 0.0
    %2187 = vmatpush1.msra.mxu0 0.0
    %2188 = vmatprep.subr.mxu0 0.0
    %2189 = vmatpush1.msra.mxu0 0.0
    %2190 = vmatprep.subr.mxu0 0.0
    %2191 = vmatpush1.msra.mxu0 0.0
    %2192 = vmatprep.subr.mxu0 0.0
    %2193 = vmatpush1.msra.mxu0 %v1198
    %2194 = vmatprep.subr.mxu0 0.0
    %2195 = vmatpush1.msra.mxu0 %v1197
    %2196 = vmatprep.subr.mxu0 0.0
    %2197 = vmatpush1.msra.mxu0 %v1196
    %2198 = vmatprep.subr.mxu0 0.0
    %2199 = vmatpush1.msra.mxu0 %v1195
    %2200 = vmatprep.subr.mxu0 0.0
    %2201 = vmatpush1.msra.mxu0 %v1194
    %2202 = vmatprep.subr.mxu0 0.0
    %2203 = vmatpush1.msra.mxu0 %v1193
    %2204 = vmatprep.subr.mxu0 0.0
    %2205 = vmatpush1.msra.mxu0 %v1192
    %2206 = vmatprep.subr.mxu0 0.0
    %2207 = vmatpush1.msra.mxu0 %v1191
    %2208 = vmatprep.subr.mxu0 0.0
    %2209 = vmatpush2.msra.mxu0 0.0
    %2210 = vmatprep.subr.mxu0 0.0
    %2211 = vmatpush2.msra.mxu0 0.0
    %2212 = vmatprep.subr.mxu0 0.0
    %2213 = vmatpush2.msra.mxu0 0.0
    %2214 = vmatprep.subr.mxu0 0.0
    %2215 = vmatpush2.msra.mxu0 0.0
    %2216 = vmatprep.subr.mxu0 0.0
    %2217 = vmatpush2.msra.mxu0 0.0
    %2218 = vmatprep.subr.mxu0 0.0
    %2219 = vmatpush2.msra.mxu0 0.0
    %2220 = vmatprep.subr.mxu0 0.0
    %2221 = vmatpush2.msra.mxu0 0.0
    %2222 = vmatprep.subr.mxu0 0.0
    %2223 = vmatpush2.msra.mxu0 0.0
    %2224 = vmatprep.subr.mxu0 0.0
    %2225 = vmatpush2.msra.mxu0 0.0
    %2226 = vmatprep.subr.mxu0 0.0
    %2227 = vmatpush2.msra.mxu0 0.0
    %2228 = vmatprep.subr.mxu0 0.0
    %2229 = vmatpush2.msra.mxu0 0.0
    %2230 = vmatprep.subr.mxu0 0.0
    %2231 = vmatpush2.msra.mxu0 0.0
    %2232 = vmatprep.subr.mxu0 0.0
    %2233 = vmatpush2.msra.mxu0 0.0
    %2234 = vmatprep.subr.mxu0 0.0
    %2235 = vmatpush2.msra.mxu0 0.0
    %2236 = vmatprep.subr.mxu0 0.0
    %2237 = vmatpush2.msra.mxu0 0.0
    %2238 = vmatprep.subr.mxu0 0.0
    %2239 = vmatpush2.msra.mxu0 0.0
    %2240 = vmatprep.mubr.f32.mxu0 0.0
    %2241 = vmatmul.mubr.f32.gmra.mxu0 %v2171
    %v2242 = vpop.f32.mrf.mxu0
    %v2243 = vadd.f32 %v2169, %v2242
    %v2244 = vpop.f32.mrf.mxu0
    %2245 = vmatprep.mubr.f32.mxu0 0.0
    %2246 = vmatmul.mubr.f32.gmra.mxu0 %v2174
    %v2247 = vpop.f32.mrf.mxu0
    %v2248 = vadd.f32 %v2169, %v2247
    %v2249 = vpop.f32.mrf.mxu0
    %2250 = vdwg.mxu0
    %v2251 = vadd.f32 %v2077, %v2243
    %v2252 = vadd.f32 %v2078, %v2248
    %v2253 = vsel %vm79, %v2251, 0.0
    %2254 = vadd.xlane.f32.xlu0 %v2253
    %v2255 = vpop.xlane.xlu0 %2254
    %v2256 = vsel %vm79, %v2252, 0.0
    %2257 = vadd.xlane.f32.xlu0 %v2256
    %v2258 = vpop.xlane.xlu0 %2257
    %v2259 = vmul.f32 %v2255, %v929
    %v2260 = vmul.f32 %v2258, %v929
    %v2261 = vsub.f32 %v2251, %v2259
    %v2262 = vsub.f32 %v2252, %v2260
    %v2263 = vmul.f32 %v2261, %v2261
    %v2264 = vmul.f32 %v2262, %v2262
    %v2265 = vsel %vm79, %v2263, 0.0
    %2266 = vadd.xlane.f32.xlu0 %v2265
    %v2267 = vpop.xlane.xlu0 %2266
    %v2268 = vsel %vm79, %v2264, 0.0
    %2269 = vadd.xlane.f32.xlu0 %v2268
    %v2270 = vpop.xlane.xlu0 %2269
    %v2271 = vmul.f32 %v2267, %v929
    %v2272 = vmul.f32 %v2270, %v929
    %v2273 = vadd.f32 %v2271, 1e-05
    %v2274 = vadd.f32 %v2272, 1e-05
    %v2275 = vrsqrt.pop %v2273
    %v2276 = vrsqrt.pop %v2274
    %v2277 = vmul.f32 %v2261, %v2275
    %v2278 = vmul.f32 %v2262, %v2276
    %v2279 = vlaneseq
    %v2280 = vshrl.u32 %v2279, 7
    %v2281 = vsub.s32 6, %v2280
    %v2282 = vrot.slane %v1200, %v2281
    %v2283 = vmul.f32 %v2277, %v2282
    %v2284 = vmul.f32 %v2278, %v2282
    %v2285 = vlaneseq
    %v2286 = vshrl.u32 %v2285, 7
    %v2287 = vsub.s32 7, %v2286
    %v2288 = vrot.slane %v1200, %v2287
    %v2289 = vadd.f32 %v2283, %v2288
    %v2290 = vadd.f32 %v2284, %v2288
    %2291 = vst.msk [vmem:[#allocation7] sm:$0xff] %vm79, %v2289
    %2292 = vst.msk [vmem:[#allocation7 + $0x8] sm:$0xff] %vm79, %v2290
    // Predicated region
    $region34: #{tpu_custom_call.1} parent=1 // pred_check
      _
    $region35: #{tpu_custom_call.1} parent=1 // pred_check_branch
      %2294 = sbr.rel (0) target = $region37
    $region36: #{tpu_custom_call.1} parent=1 // pred_region
      %s2296 = ssub.s32 256, 256
      %2297 = vsyncadd [#allocation4], %s2296
      %s2298 = sshll.u32 [#allocation7], 4
      %s2299 = int_to_ptr.vmem [resolvable:$true] %s2298
      %2304 = dma.vmem_to_hbm [thread:$0]  %s2299, 256, %s6, [#allocation4], 128, 128, 8
    $region37: #{tpu_custom_call.1} parent=1 // pred_fallthru
      _
    // Predicated region
    $region38: #{tpu_custom_call.1} parent=1 // pred_check
      _
    $region39: #{tpu_custom_call.1} parent=1 // pred_check_branch
      %2306 = sbr.rel (0) target = $region41
    $region40: #{tpu_custom_call.1} parent=1 // pred_region
      %2307 = dma.done [#allocation4], 256
    $region41: #{tpu_custom_call.1} parent=1 // pred_fallthru
      _
    %2308 = vsyncpa [#allocation3], 1
    %2309 = vsyncpa [#allocation6], 1
    %2310 = vsyncpa [#allocation4], 1

</llo_original>
